<compile_context>
chip_gen: v7x
topology: tpu7x:2x2x1
jax: 0.10.0
libtpu: 0.0.40
codegen_flags: <defaults>
</compile_context>

<pallas_src>
import math
from functools import partial

import jax
import jax.numpy as jnp
from jax.experimental import pallas as pl
from jax.experimental.pallas import tpu as pltpu


# ----------------------------------------------------------------------------
# Fused kernel: whole forward in one step, everything VMEM-resident.
# ----------------------------------------------------------------------------
def _mha_fused_kernel(hs_ref, enc_ref,
                      wq_ref, bq_ref, wkv_ref, bkv_ref, wo_ref, bo_ref,
                      qslab_ref, kvslab_ref, sp_ref,
                      *, B, Sq, Sk, num_heads, head_dim, scale):
    AH = num_heads * head_dim

    hs = hs_ref[...]        # (B*Sq, H)
    enc = enc_ref[...]      # (B*Sk, Hc)

    # ---- Projections (batch folded into sublanes, K+V fused into one GEMM) --
    q = jnp.dot(hs, wq_ref[...], preferred_element_type=jnp.float32) + bq_ref[...]
    kv = jnp.dot(enc, wkv_ref[...], preferred_element_type=jnp.float32) + bkv_ref[...]

    # Raw projections are module outputs -> write packed slabs once.
    kvslab_ref[...] = kv                    # [k | v], 2*AH lanes wide
    qslab_ref[:, AH:2 * AH] = q             # q projection part of slab0

    k = kv[:, :AH]
    v = kv[:, AH:]
    # Fold 1/sqrt(dH) into q: (q*s)@k^T == (q@k^T)*s, returned scores unchanged.
    qs = q * scale

    # ---- Per-(batch, head) attention blocks, statically unrolled (B*nH=8) ---
    for b in range(B):
        q_b = qs[b * Sq:(b + 1) * Sq, :]
        k_b = k[b * Sk:(b + 1) * Sk, :]
        v_b = v[b * Sk:(b + 1) * Sk, :]
        for h in range(num_heads):
            lo = h * head_dim
            hi = lo + head_dim
            q_h = q_b[:, lo:hi]             # (Sq, dH)
            k_h = k_b[:, lo:hi]             # (Sk, dH)
            v_h = v_b[:, lo:hi]             # (Sk, dH)

            # q @ k^T via shared contracting dim -> no in-register transpose.
            s_h = jax.lax.dot_general(
                q_h, k_h,
                dimension_numbers=(((1,), (1,)), ((), ())),
                preferred_element_type=jnp.float32)      # (Sq, Sk)

            # numerically stable softmax along keys (exact f32 parity)
            m_h = jnp.max(s_h, axis=-1, keepdims=True)
            e_h = jnp.exp(s_h - m_h)
            d_h = jnp.sum(e_h, axis=-1, keepdims=True)
            p_h = e_h * pl.reciprocal(d_h, approx=False)

            # lane-dense packed scores/probs: rows b*Sq.., cols h*Sk..
            sp_ref[b * Sq:(b + 1) * Sq, h * Sk:(h + 1) * Sk] = s_h
            sp_ref[b * Sq:(b + 1) * Sq,
                   num_heads * Sk + h * Sk:num_heads * Sk + (h + 1) * Sk] = p_h

            # context for this head written straight into its lane sub-range
            # (no lane-axis concatenate).
            qslab_ref[b * Sq:(b + 1) * Sq, 2 * AH + lo:2 * AH + hi] = jnp.dot(
                p_h, v_h, preferred_element_type=jnp.float32)

    # ---- Output dense + residual, still all in VMEM -------------------------
    ctx = qslab_ref[:, 2 * AH:3 * AH]
    out = jnp.dot(ctx, wo_ref[...], preferred_element_type=jnp.float32) + bo_ref[...]
    qslab_ref[:, :AH] = out + hs            # embeddings part of slab0


# ----------------------------------------------------------------------------
# Wrapper
# ----------------------------------------------------------------------------
def transpose_for_scores(x, num_heads, head_dim):
    # [B, S, AH] -> [B, nH, S, dH]  (tiny aux outputs only)
    B, S, _ = x.shape
    return x.reshape(B, S, num_heads, head_dim).transpose(0, 2, 1, 3)


def prepare_params(params):
    """Pre-transpose / pre-pack weights once at init (PyTorch W is [out, in])."""
    return {
        "wq_t": params["wq"].T,                                           # (H, AH)
        "bq": params["bq"].reshape(1, -1),
        "wkv_t": jnp.concatenate([params["wk"].T, params["wv"].T], axis=1),  # (Hc, 2*AH)
        "bkv": jnp.concatenate([params["bk"], params["bv"]]).reshape(1, -1),
        "wo_t": params["wo"].T,                                           # (AH, AH)
        "bo": params["bo"].reshape(1, -1),
    }


def multi_head_attention_forward(prepared, hidden_states, encoder_hidden_states,
                                 num_heads, head_dim):
    """Cross-attention forward (attention_mask/head_mask/past_kv/rotary = None,
    position_embedding_type='absolute', is_decoder=False), matching PyTorch."""
    B, Sq, H = hidden_states.shape
    _, Sk, Hc = encoder_hidden_states.shape
    AH = num_heads * head_dim
    scale = 1.0 / math.sqrt(head_dim)

    # Fold batch into the sublane (row) axis.
    hs2d = hidden_states.reshape(B * Sq, H)
    enc2d = encoder_hidden_states.reshape(B * Sk, Hc)

    kern = partial(_mha_fused_kernel, B=B, Sq=Sq, Sk=Sk,
                   num_heads=num_heads, head_dim=head_dim, scale=scale)

    vmem = pl.BlockSpec(memory_space=pltpu.MemorySpace.VMEM)

    out_shapes = (
        jax.ShapeDtypeStruct((B * Sq, 3 * AH), jnp.float32),               # [emb | q | ctx]
        jax.ShapeDtypeStruct((B * Sk, 2 * AH), jnp.float32),               # [k | v]
        jax.ShapeDtypeStruct((B * Sq, 2 * num_heads * Sk), jnp.float32),   # [scores | probs]
    )

    q_slab, kv_slab, sp_slab = pl.pallas_call(
        kern,
        out_shape=out_shapes,
        in_specs=[vmem] * 8,
        out_specs=(vmem, vmem, vmem),
    )(hs2d, enc2d,
      prepared["wq_t"], prepared["bq"],
      prepared["wkv_t"], prepared["bkv"],
      prepared["wo_t"], prepared["bo"])

    # Cheap slices / reshapes of tiny aux outputs (hot path is done).
    emb = q_slab[:, :AH].reshape(B, Sq, AH)
    q_p = q_slab[:, AH:2 * AH].reshape(B, Sq, AH)
    ctx = q_slab[:, 2 * AH:3 * AH].reshape(B, Sq, AH)
    k_p = kv_slab[:, :AH].reshape(B, Sk, AH)
    v_p = kv_slab[:, AH:].reshape(B, Sk, AH)
    scores = sp_slab[:, :num_heads * Sk].reshape(B, Sq, num_heads, Sk).transpose(0, 2, 1, 3)
    probs = sp_slab[:, num_heads * Sk:].reshape(B, Sq, num_heads, Sk).transpose(0, 2, 1, 3)

    return {
        "embeddings": emb,
        "query_heads": transpose_for_scores(q_p, num_heads, head_dim),
        "value_heads": transpose_for_scores(v_p, num_heads, head_dim),
        "key_heads": transpose_for_scores(k_p, num_heads, head_dim),
        "attention_probs": probs,
        "attention_scores": scores,
        "context_layer": ctx,
    }
    # TODO(synk): attention_mask / head_mask / past_key_value / rotary_pos_emb /
    # relative_key position embeddings are not exercised in this cross-attention
    # configuration and are omitted.


# ----------------------------------------------------------------------------
# Pure-JAX reference for a correctness sanity check.
# ----------------------------------------------------------------------------
def reference_forward(params, hidden_states, encoder_hidden_states, num_heads, head_dim):
    B, Sq, H = hidden_states.shape
    AH = num_heads * head_dim
    scale = 1.0 / math.sqrt(head_dim)
    q = hidden_states @ params["wq"].T + params["bq"]
    k = encoder_hidden_states @ params["wk"].T + params["bk"]
    v = encoder_hidden_states @ params["wv"].T + params["bv"]
    qh = transpose_for_scores(q, num_heads, head_dim)
    kh = transpose_for_scores(k, num_heads, head_dim)
    vh = transpose_for_scores(v, num_heads, head_dim)
    scores = jnp.einsum("bhqd,bhkd->bhqk", qh, kh) * scale
    probs = jax.nn.softmax(scores, axis=-1)
    ctx = jnp.einsum("bhqk,bhkd->bhqd", probs, vh)
    ctx = ctx.transpose(0, 2, 1, 3).reshape(B, Sq, AH)
    emb = ctx @ params["wo"].T + params["bo"] + hidden_states
    return {"embeddings": emb, "query_heads": qh, "key_heads": kh, "value_heads": vh,
            "attention_probs": probs, "attention_scores": scores, "context_layer": ctx}


if __name__ == "__main__":
    # config: hidden_size=32, num_attention_heads=4, context_input_size=16,
    #         add_linear_bias=True, position_embedding_type='absolute', is_decoder=False
    B, Sq, Sk = 2, 8, 8
    hidden_size = 32
    context_input_size = 16
    num_heads = 4
    head_dim = hidden_size // num_heads
    all_head = num_heads * head_dim

    key = jax.random.PRNGKey(0)
    keys = jax.random.split(key, 10)

    # Deterministic parameter init (PyTorch weight shape convention: [out, in]).
    params = {
        "wq": 0.05 * jax.random.normal(keys[0], (all_head, hidden_size), jnp.float32),
        "bq": 0.01 * jax.random.normal(keys[1], (all_head,), jnp.float32),
        "wk": 0.05 * jax.random.normal(keys[2], (all_head, context_input_size), jnp.float32),
        "bk": 0.01 * jax.random.normal(keys[3], (all_head,), jnp.float32),
        "wv": 0.05 * jax.random.normal(keys[4], (all_head, context_input_size), jnp.float32),
        "bv": 0.01 * jax.random.normal(keys[5], (all_head,), jnp.float32),
        "wo": 0.05 * jax.random.normal(keys[6], (all_head, hidden_size), jnp.float32),
        "bo": 0.01 * jax.random.normal(keys[7], (all_head,), jnp.float32),
    }
    prepared = prepare_params(params)   # weights transposed/packed ONCE, not per forward

    hidden_states = jax.random.normal(keys[8], (B, Sq, hidden_size), jnp.float32)
    encoder_hidden_states = jax.random.normal(
        keys[9], (B, Sk, context_input_size), jnp.float32
    )

    fwd = jax.jit(multi_head_attention_forward, static_argnums=(3, 4))
    out = fwd(prepared, hidden_states, encoder_hidden_states, num_heads, head_dim)
    out = jax.tree_util.tree_map(jax.block_until_ready, out)

    ref = reference_forward(
        params, hidden_states, encoder_hidden_states, num_heads, head_dim
    )
    for name in ("embeddings", "query_heads", "key_heads", "value_heads",
                 "attention_probs", "attention_scores", "context_layer"):
        assert jnp.allclose(out[name], ref[name], atol=1e-5, rtol=1e-4), name

    print("KERNEL_OK")
</pallas_src>

<mosaic_0001>
module attributes {stable_mosaic.version = 11 : i64} {
  func.func @_mha_fused_kernel(%arg0: memref<16x32xf32, #tpu.memory_space<vmem>>, %arg1: memref<16x16xf32, #tpu.memory_space<vmem>>, %arg2: memref<32x32xf32, #tpu.memory_space<vmem>>, %arg3: memref<1x32xf32, #tpu.memory_space<vmem>>, %arg4: memref<16x64xf32, #tpu.memory_space<vmem>>, %arg5: memref<1x64xf32, #tpu.memory_space<vmem>>, %arg6: memref<32x32xf32, #tpu.memory_space<vmem>>, %arg7: memref<1x32xf32, #tpu.memory_space<vmem>>, %arg8: memref<16x96xf32, #tpu.memory_space<vmem>>, %arg9: memref<16x64xf32, #tpu.memory_space<vmem>>, %arg10: memref<16x64xf32, #tpu.memory_space<vmem>>) attributes {dimension_semantics = [], scalar_prefetch = 0 : i64, scratch_operands = 0 : i64, tpu.core_type = #tpu.core_type<tc>} {
    %c0 = arith.constant 0 : index
    %c0_0 = arith.constant 0 : index
    %0 = vector.load %arg0[%c0, %c0_0] : memref<16x32xf32, #tpu.memory_space<vmem>>, vector<16x32xf32>
    %c0_1 = arith.constant 0 : index
    %c0_2 = arith.constant 0 : index
    %1 = vector.load %arg1[%c0_1, %c0_2] : memref<16x16xf32, #tpu.memory_space<vmem>>, vector<16x16xf32>
    %c0_3 = arith.constant 0 : index
    %c0_4 = arith.constant 0 : index
    %2 = vector.load %arg2[%c0_3, %c0_4] : memref<32x32xf32, #tpu.memory_space<vmem>>, vector<32x32xf32>
    %cst = arith.constant dense<0.000000e+00> : vector<16x32xf32>
    %3 = tpu.matmul %0, %2, %cst {dimension_numbers = #tpu.dot_dimension_numbers<[1], [0], [0], [1], [0, 0, 1, 1], [], []>} : vector<16x32xf32>, vector<32x32xf32>, vector<16x32xf32> -> vector<16x32xf32>
    %c0_5 = arith.constant 0 : index
    %c0_6 = arith.constant 0 : index
    %4 = vector.load %arg3[%c0_5, %c0_6] : memref<1x32xf32, #tpu.memory_space<vmem>>, vector<1x32xf32>
    %5 = vector.broadcast %4 : vector<1x32xf32> to vector<16x32xf32>
    %6 = arith.addf %3, %5 : vector<16x32xf32>
    %c0_7 = arith.constant 0 : index
    %c0_8 = arith.constant 0 : index
    %7 = vector.load %arg4[%c0_7, %c0_8] : memref<16x64xf32, #tpu.memory_space<vmem>>, vector<16x64xf32>
    %cst_9 = arith.constant dense<0.000000e+00> : vector<16x64xf32>
    %8 = tpu.matmul %1, %7, %cst_9 {dimension_numbers = #tpu.dot_dimension_numbers<[1], [0], [0], [1], [0, 0, 1, 1], [], []>} : vector<16x16xf32>, vector<16x64xf32>, vector<16x64xf32> -> vector<16x64xf32>
    %c0_10 = arith.constant 0 : index
    %c0_11 = arith.constant 0 : index
    %9 = vector.load %arg5[%c0_10, %c0_11] : memref<1x64xf32, #tpu.memory_space<vmem>>, vector<1x64xf32>
    %10 = vector.broadcast %9 : vector<1x64xf32> to vector<16x64xf32>
    %11 = arith.addf %8, %10 : vector<16x64xf32>
    %c0_12 = arith.constant 0 : index
    %c0_13 = arith.constant 0 : index
    %12 = vector.load %arg9[%c0_12, %c0_13] : memref<16x64xf32, #tpu.memory_space<vmem>>, vector<16x64xf32>
    tpu.vector_store %arg9[%c0_12, %c0_13], %11 {strides = array<i32>} : memref<16x64xf32, #tpu.memory_space<vmem>>, vector<16x64xf32>,
    %c0_14 = arith.constant 0 : index
    %c32 = arith.constant 32 : index
    %13 = vector.load %arg8[%c0_14, %c32] : memref<16x96xf32, #tpu.memory_space<vmem>>, vector<16x32xf32>
    tpu.vector_store %arg8[%c0_14, %c32], %6 {strides = array<i32>} : memref<16x96xf32, #tpu.memory_space<vmem>>, vector<16x32xf32>,
    %14 = vector.extract_strided_slice %11 {offsets = [0, 0], sizes = [16, 32], strides = [1, 1]} : vector<16x64xf32> to vector<16x32xf32>
    %15 = vector.extract_strided_slice %11 {offsets = [0, 32], sizes = [16, 32], strides = [1, 1]} : vector<16x64xf32> to vector<16x32xf32>
    %cst_15 = arith.constant 0.353553385 : f32
    %16 = vector.broadcast %cst_15 : f32 to vector<16x32xf32>
    %17 = arith.mulf %6, %16 : vector<16x32xf32>
    %18 = vector.extract_strided_slice %17 {offsets = [0, 0], sizes = [8, 32], strides = [1, 1]} : vector<16x32xf32> to vector<8x32xf32>
    %19 = vector.extract_strided_slice %14 {offsets = [0, 0], sizes = [8, 32], strides = [1, 1]} : vector<16x32xf32> to vector<8x32xf32>
    %20 = vector.extract_strided_slice %15 {offsets = [0, 0], sizes = [8, 32], strides = [1, 1]} : vector<16x32xf32> to vector<8x32xf32>
    %21 = vector.extract_strided_slice %18 {offsets = [0, 0], sizes = [8, 8], strides = [1, 1]} : vector<8x32xf32> to vector<8x8xf32>
    %22 = vector.extract_strided_slice %19 {offsets = [0, 0], sizes = [8, 8], strides = [1, 1]} : vector<8x32xf32> to vector<8x8xf32>
    %23 = vector.extract_strided_slice %20 {offsets = [0, 0], sizes = [8, 8], strides = [1, 1]} : vector<8x32xf32> to vector<8x8xf32>
    %cst_16 = arith.constant dense<0.000000e+00> : vector<8x8xf32>
    %24 = tpu.matmul %21, %22, %cst_16 {dimension_numbers = #tpu.dot_dimension_numbers<[1], [1], [0], [0], [0, 0, 1, 0], [], []>} : vector<8x8xf32>, vector<8x8xf32>, vector<8x8xf32> -> vector<8x8xf32>
    %cst_17 = arith.constant dense<0xFF800000> : vector<8xf32>
    %25 = vector.multi_reduction <maximumf>, %24, %cst_17 [1] : vector<8x8xf32> to vector<8xf32>
    %26 = vector.shape_cast %25 : vector<8xf32> to vector<8x1xf32>
    %27 = vector.broadcast %26 : vector<8x1xf32> to vector<8x8xf32>
    %28 = arith.subf %24, %27 : vector<8x8xf32>
    %29 = math.exp %28 : vector<8x8xf32>
    %cst_18 = arith.constant dense<0.000000e+00> : vector<8xf32>
    %30 = vector.multi_reduction <add>, %29, %cst_18 [1] : vector<8x8xf32> to vector<8xf32>
    %31 = vector.shape_cast %30 : vector<8xf32> to vector<8x1xf32>
    %32 = tpu.reciprocal %31 : vector<8x1xf32> -> vector<8x1xf32>
    %33 = vector.broadcast %32 : vector<8x1xf32> to vector<8x8xf32>
    %34 = arith.mulf %29, %33 : vector<8x8xf32>
    %c0_19 = arith.constant 0 : index
    %c0_20 = arith.constant 0 : index
    %35 = vector.load %arg10[%c0_19, %c0_20] : memref<16x64xf32, #tpu.memory_space<vmem>>, vector<8x8xf32>
    tpu.vector_store %arg10[%c0_19, %c0_20], %24 {strides = array<i32>} : memref<16x64xf32, #tpu.memory_space<vmem>>, vector<8x8xf32>,
    %c0_21 = arith.constant 0 : index
    %c32_22 = arith.constant 32 : index
    %36 = vector.load %arg10[%c0_21, %c32_22] : memref<16x64xf32, #tpu.memory_space<vmem>>, vector<8x8xf32>
    tpu.vector_store %arg10[%c0_21, %c32_22], %34 {strides = array<i32>} : memref<16x64xf32, #tpu.memory_space<vmem>>, vector<8x8xf32>,
    %cst_23 = arith.constant dense<0.000000e+00> : vector<8x8xf32>
    %37 = tpu.matmul %34, %23, %cst_23 {dimension_numbers = #tpu.dot_dimension_numbers<[1], [0], [0], [1], [0, 0, 1, 1], [], []>} : vector<8x8xf32>, vector<8x8xf32>, vector<8x8xf32> -> vector<8x8xf32>
    %c0_24 = arith.constant 0 : index
    %c64 = arith.constant 64 : index
    %38 = vector.load %arg8[%c0_24, %c64] : memref<16x96xf32, #tpu.memory_space<vmem>>, vector<8x8xf32>
    tpu.vector_store %arg8[%c0_24, %c64], %37 {strides = array<i32>} : memref<16x96xf32, #tpu.memory_space<vmem>>, vector<8x8xf32>,
    %39 = vector.extract_strided_slice %18 {offsets = [0, 8], sizes = [8, 8], strides = [1, 1]} : vector<8x32xf32> to vector<8x8xf32>
    %40 = vector.extract_strided_slice %19 {offsets = [0, 8], sizes = [8, 8], strides = [1, 1]} : vector<8x32xf32> to vector<8x8xf32>
    %41 = vector.extract_strided_slice %20 {offsets = [0, 8], sizes = [8, 8], strides = [1, 1]} : vector<8x32xf32> to vector<8x8xf32>
    %cst_25 = arith.constant dense<0.000000e+00> : vector<8x8xf32>
    %42 = tpu.matmul %39, %40, %cst_25 {dimension_numbers = #tpu.dot_dimension_numbers<[1], [1], [0], [0], [0, 0, 1, 0], [], []>} : vector<8x8xf32>, vector<8x8xf32>, vector<8x8xf32> -> vector<8x8xf32>
    %cst_26 = arith.constant dense<0xFF800000> : vector<8xf32>
    %43 = vector.multi_reduction <maximumf>, %42, %cst_26 [1] : vector<8x8xf32> to vector<8xf32>
    %44 = vector.shape_cast %43 : vector<8xf32> to vector<8x1xf32>
    %45 = vector.broadcast %44 : vector<8x1xf32> to vector<8x8xf32>
    %46 = arith.subf %42, %45 : vector<8x8xf32>
    %47 = math.exp %46 : vector<8x8xf32>
    %cst_27 = arith.constant dense<0.000000e+00> : vector<8xf32>
    %48 = vector.multi_reduction <add>, %47, %cst_27 [1] : vector<8x8xf32> to vector<8xf32>
    %49 = vector.shape_cast %48 : vector<8xf32> to vector<8x1xf32>
    %50 = tpu.reciprocal %49 : vector<8x1xf32> -> vector<8x1xf32>
    %51 = vector.broadcast %50 : vector<8x1xf32> to vector<8x8xf32>
    %52 = arith.mulf %47, %51 : vector<8x8xf32>
    %c0_28 = arith.constant 0 : index
    %c8 = arith.constant 8 : index
    %53 = vector.load %arg10[%c0_28, %c8] : memref<16x64xf32, #tpu.memory_space<vmem>>, vector<8x8xf32>
    tpu.vector_store %arg10[%c0_28, %c8], %42 {strides = array<i32>} : memref<16x64xf32, #tpu.memory_space<vmem>>, vector<8x8xf32>,
    %c0_29 = arith.constant 0 : index
    %c40 = arith.constant 40 : index
    %54 = vector.load %arg10[%c0_29, %c40] : memref<16x64xf32, #tpu.memory_space<vmem>>, vector<8x8xf32>
    tpu.vector_store %arg10[%c0_29, %c40], %52 {strides = array<i32>} : memref<16x64xf32, #tpu.memory_space<vmem>>, vector<8x8xf32>,
    %cst_30 = arith.constant dense<0.000000e+00> : vector<8x8xf32>
    %55 = tpu.matmul %52, %41, %cst_30 {dimension_numbers = #tpu.dot_dimension_numbers<[1], [0], [0], [1], [0, 0, 1, 1], [], []>} : vector<8x8xf32>, vector<8x8xf32>, vector<8x8xf32> -> vector<8x8xf32>
    %c0_31 = arith.constant 0 : index
    %c72 = arith.constant 72 : index
    %56 = vector.load %arg8[%c0_31, %c72] : memref<16x96xf32, #tpu.memory_space<vmem>>, vector<8x8xf32>
    tpu.vector_store %arg8[%c0_31, %c72], %55 {strides = array<i32>} : memref<16x96xf32, #tpu.memory_space<vmem>>, vector<8x8xf32>,
    %57 = vector.extract_strided_slice %18 {offsets = [0, 16], sizes = [8, 8], strides = [1, 1]} : vector<8x32xf32> to vector<8x8xf32>
    %58 = vector.extract_strided_slice %19 {offsets = [0, 16], sizes = [8, 8], strides = [1, 1]} : vector<8x32xf32> to vector<8x8xf32>
    %59 = vector.extract_strided_slice %20 {offsets = [0, 16], sizes = [8, 8], strides = [1, 1]} : vector<8x32xf32> to vector<8x8xf32>
    %cst_32 = arith.constant dense<0.000000e+00> : vector<8x8xf32>
    %60 = tpu.matmul %57, %58, %cst_32 {dimension_numbers = #tpu.dot_dimension_numbers<[1], [1], [0], [0], [0, 0, 1, 0], [], []>} : vector<8x8xf32>, vector<8x8xf32>, vector<8x8xf32> -> vector<8x8xf32>
    %cst_33 = arith.constant dense<0xFF800000> : vector<8xf32>
    %61 = vector.multi_reduction <maximumf>, %60, %cst_33 [1] : vector<8x8xf32> to vector<8xf32>
    %62 = vector.shape_cast %61 : vector<8xf32> to vector<8x1xf32>
    %63 = vector.broadcast %62 : vector<8x1xf32> to vector<8x8xf32>
    %64 = arith.subf %60, %63 : vector<8x8xf32>
    %65 = math.exp %64 : vector<8x8xf32>
    %cst_34 = arith.constant dense<0.000000e+00> : vector<8xf32>
    %66 = vector.multi_reduction <add>, %65, %cst_34 [1] : vector<8x8xf32> to vector<8xf32>
    %67 = vector.shape_cast %66 : vector<8xf32> to vector<8x1xf32>
    %68 = tpu.reciprocal %67 : vector<8x1xf32> -> vector<8x1xf32>
    %69 = vector.broadcast %68 : vector<8x1xf32> to vector<8x8xf32>
    %70 = arith.mulf %65, %69 : vector<8x8xf32>
    %c0_35 = arith.constant 0 : index
    %c16 = arith.constant 16 : index
    %71 = vector.load %arg10[%c0_35, %c16] : memref<16x64xf32, #tpu.memory_space<vmem>>, vector<8x8xf32>
    tpu.vector_store %arg10[%c0_35, %c16], %60 {strides = array<i32>} : memref<16x64xf32, #tpu.memory_space<vmem>>, vector<8x8xf32>,
    %c0_36 = arith.constant 0 : index
    %c48 = arith.constant 48 : index
    %72 = vector.load %arg10[%c0_36, %c48] : memref<16x64xf32, #tpu.memory_space<vmem>>, vector<8x8xf32>
    tpu.vector_store %arg10[%c0_36, %c48], %70 {strides = array<i32>} : memref<16x64xf32, #tpu.memory_space<vmem>>, vector<8x8xf32>,
    %cst_37 = arith.constant dense<0.000000e+00> : vector<8x8xf32>
    %73 = tpu.matmul %70, %59, %cst_37 {dimension_numbers = #tpu.dot_dimension_numbers<[1], [0], [0], [1], [0, 0, 1, 1], [], []>} : vector<8x8xf32>, vector<8x8xf32>, vector<8x8xf32> -> vector<8x8xf32>
    %c0_38 = arith.constant 0 : index
    %c80 = arith.constant 80 : index
    %74 = vector.load %arg8[%c0_38, %c80] : memref<16x96xf32, #tpu.memory_space<vmem>>, vector<8x8xf32>
    tpu.vector_store %arg8[%c0_38, %c80], %73 {strides = array<i32>} : memref<16x96xf32, #tpu.memory_space<vmem>>, vector<8x8xf32>,
    %75 = vector.extract_strided_slice %18 {offsets = [0, 24], sizes = [8, 8], strides = [1, 1]} : vector<8x32xf32> to vector<8x8xf32>
    %76 = vector.extract_strided_slice %19 {offsets = [0, 24], sizes = [8, 8], strides = [1, 1]} : vector<8x32xf32> to vector<8x8xf32>
    %77 = vector.extract_strided_slice %20 {offsets = [0, 24], sizes = [8, 8], strides = [1, 1]} : vector<8x32xf32> to vector<8x8xf32>
    %cst_39 = arith.constant dense<0.000000e+00> : vector<8x8xf32>
    %78 = tpu.matmul %75, %76, %cst_39 {dimension_numbers = #tpu.dot_dimension_numbers<[1], [1], [0], [0], [0, 0, 1, 0], [], []>} : vector<8x8xf32>, vector<8x8xf32>, vector<8x8xf32> -> vector<8x8xf32>
    %cst_40 = arith.constant dense<0xFF800000> : vector<8xf32>
    %79 = vector.multi_reduction <maximumf>, %78, %cst_40 [1] : vector<8x8xf32> to vector<8xf32>
    %80 = vector.shape_cast %79 : vector<8xf32> to vector<8x1xf32>
    %81 = vector.broadcast %80 : vector<8x1xf32> to vector<8x8xf32>
    %82 = arith.subf %78, %81 : vector<8x8xf32>
    %83 = math.exp %82 : vector<8x8xf32>
    %cst_41 = arith.constant dense<0.000000e+00> : vector<8xf32>
    %84 = vector.multi_reduction <add>, %83, %cst_41 [1] : vector<8x8xf32> to vector<8xf32>
    %85 = vector.shape_cast %84 : vector<8xf32> to vector<8x1xf32>
    %86 = tpu.reciprocal %85 : vector<8x1xf32> -> vector<8x1xf32>
    %87 = vector.broadcast %86 : vector<8x1xf32> to vector<8x8xf32>
    %88 = arith.mulf %83, %87 : vector<8x8xf32>
    %c0_42 = arith.constant 0 : index
    %c24 = arith.constant 24 : index
    %89 = vector.load %arg10[%c0_42, %c24] : memref<16x64xf32, #tpu.memory_space<vmem>>, vector<8x8xf32>
    tpu.vector_store %arg10[%c0_42, %c24], %78 {strides = array<i32>} : memref<16x64xf32, #tpu.memory_space<vmem>>, vector<8x8xf32>,
    %c0_43 = arith.constant 0 : index
    %c56 = arith.constant 56 : index
    %90 = vector.load %arg10[%c0_43, %c56] : memref<16x64xf32, #tpu.memory_space<vmem>>, vector<8x8xf32>
    tpu.vector_store %arg10[%c0_43, %c56], %88 {strides = array<i32>} : memref<16x64xf32, #tpu.memory_space<vmem>>, vector<8x8xf32>,
    %cst_44 = arith.constant dense<0.000000e+00> : vector<8x8xf32>
    %91 = tpu.matmul %88, %77, %cst_44 {dimension_numbers = #tpu.dot_dimension_numbers<[1], [0], [0], [1], [0, 0, 1, 1], [], []>} : vector<8x8xf32>, vector<8x8xf32>, vector<8x8xf32> -> vector<8x8xf32>
    %c0_45 = arith.constant 0 : index
    %c88 = arith.constant 88 : index
    %92 = vector.load %arg8[%c0_45, %c88] : memref<16x96xf32, #tpu.memory_space<vmem>>, vector<8x8xf32>
    tpu.vector_store %arg8[%c0_45, %c88], %91 {strides = array<i32>} : memref<16x96xf32, #tpu.memory_space<vmem>>, vector<8x8xf32>,
    %93 = vector.extract_strided_slice %17 {offsets = [8, 0], sizes = [8, 32], strides = [1, 1]} : vector<16x32xf32> to vector<8x32xf32>
    %94 = vector.extract_strided_slice %14 {offsets = [8, 0], sizes = [8, 32], strides = [1, 1]} : vector<16x32xf32> to vector<8x32xf32>
    %95 = vector.extract_strided_slice %15 {offsets = [8, 0], sizes = [8, 32], strides = [1, 1]} : vector<16x32xf32> to vector<8x32xf32>
    %96 = vector.extract_strided_slice %93 {offsets = [0, 0], sizes = [8, 8], strides = [1, 1]} : vector<8x32xf32> to vector<8x8xf32>
    %97 = vector.extract_strided_slice %94 {offsets = [0, 0], sizes = [8, 8], strides = [1, 1]} : vector<8x32xf32> to vector<8x8xf32>
    %98 = vector.extract_strided_slice %95 {offsets = [0, 0], sizes = [8, 8], strides = [1, 1]} : vector<8x32xf32> to vector<8x8xf32>
    %cst_46 = arith.constant dense<0.000000e+00> : vector<8x8xf32>
    %99 = tpu.matmul %96, %97, %cst_46 {dimension_numbers = #tpu.dot_dimension_numbers<[1], [1], [0], [0], [0, 0, 1, 0], [], []>} : vector<8x8xf32>, vector<8x8xf32>, vector<8x8xf32> -> vector<8x8xf32>
    %cst_47 = arith.constant dense<0xFF800000> : vector<8xf32>
    %100 = vector.multi_reduction <maximumf>, %99, %cst_47 [1] : vector<8x8xf32> to vector<8xf32>
    %101 = vector.shape_cast %100 : vector<8xf32> to vector<8x1xf32>
    %102 = vector.broadcast %101 : vector<8x1xf32> to vector<8x8xf32>
    %103 = arith.subf %99, %102 : vector<8x8xf32>
    %104 = math.exp %103 : vector<8x8xf32>
    %cst_48 = arith.constant dense<0.000000e+00> : vector<8xf32>
    %105 = vector.multi_reduction <add>, %104, %cst_48 [1] : vector<8x8xf32> to vector<8xf32>
    %106 = vector.shape_cast %105 : vector<8xf32> to vector<8x1xf32>
    %107 = tpu.reciprocal %106 : vector<8x1xf32> -> vector<8x1xf32>
    %108 = vector.broadcast %107 : vector<8x1xf32> to vector<8x8xf32>
    %109 = arith.mulf %104, %108 : vector<8x8xf32>
    %c8_49 = arith.constant 8 : index
    %c0_50 = arith.constant 0 : index
    %110 = vector.load %arg10[%c8_49, %c0_50] : memref<16x64xf32, #tpu.memory_space<vmem>>, vector<8x8xf32>
    tpu.vector_store %arg10[%c8_49, %c0_50], %99 {strides = array<i32>} : memref<16x64xf32, #tpu.memory_space<vmem>>, vector<8x8xf32>,
    %c8_51 = arith.constant 8 : index
    %c32_52 = arith.constant 32 : index
    %111 = vector.load %arg10[%c8_51, %c32_52] : memref<16x64xf32, #tpu.memory_space<vmem>>, vector<8x8xf32>
    tpu.vector_store %arg10[%c8_51, %c32_52], %109 {strides = array<i32>} : memref<16x64xf32, #tpu.memory_space<vmem>>, vector<8x8xf32>,
    %cst_53 = arith.constant dense<0.000000e+00> : vector<8x8xf32>
    %112 = tpu.matmul %109, %98, %cst_53 {dimension_numbers = #tpu.dot_dimension_numbers<[1], [0], [0], [1], [0, 0, 1, 1], [], []>} : vector<8x8xf32>, vector<8x8xf32>, vector<8x8xf32> -> vector<8x8xf32>
    %c8_54 = arith.constant 8 : index
    %c64_55 = arith.constant 64 : index
    %113 = vector.load %arg8[%c8_54, %c64_55] : memref<16x96xf32, #tpu.memory_space<vmem>>, vector<8x8xf32>
    tpu.vector_store %arg8[%c8_54, %c64_55], %112 {strides = array<i32>} : memref<16x96xf32, #tpu.memory_space<vmem>>, vector<8x8xf32>,
    %114 = vector.extract_strided_slice %93 {offsets = [0, 8], sizes = [8, 8], strides = [1, 1]} : vector<8x32xf32> to vector<8x8xf32>
    %115 = vector.extract_strided_slice %94 {offsets = [0, 8], sizes = [8, 8], strides = [1, 1]} : vector<8x32xf32> to vector<8x8xf32>
    %116 = vector.extract_strided_slice %95 {offsets = [0, 8], sizes = [8, 8], strides = [1, 1]} : vector<8x32xf32> to vector<8x8xf32>
    %cst_56 = arith.constant dense<0.000000e+00> : vector<8x8xf32>
    %117 = tpu.matmul %114, %115, %cst_56 {dimension_numbers = #tpu.dot_dimension_numbers<[1], [1], [0], [0], [0, 0, 1, 0], [], []>} : vector<8x8xf32>, vector<8x8xf32>, vector<8x8xf32> -> vector<8x8xf32>
    %cst_57 = arith.constant dense<0xFF800000> : vector<8xf32>
    %118 = vector.multi_reduction <maximumf>, %117, %cst_57 [1] : vector<8x8xf32> to vector<8xf32>
    %119 = vector.shape_cast %118 : vector<8xf32> to vector<8x1xf32>
    %120 = vector.broadcast %119 : vector<8x1xf32> to vector<8x8xf32>
    %121 = arith.subf %117, %120 : vector<8x8xf32>
    %122 = math.exp %121 : vector<8x8xf32>
    %cst_58 = arith.constant dense<0.000000e+00> : vector<8xf32>
    %123 = vector.multi_reduction <add>, %122, %cst_58 [1] : vector<8x8xf32> to vector<8xf32>
    %124 = vector.shape_cast %123 : vector<8xf32> to vector<8x1xf32>
    %125 = tpu.reciprocal %124 : vector<8x1xf32> -> vector<8x1xf32>
    %126 = vector.broadcast %125 : vector<8x1xf32> to vector<8x8xf32>
    %127 = arith.mulf %122, %126 : vector<8x8xf32>
    %c8_59 = arith.constant 8 : index
    %c8_60 = arith.constant 8 : index
    %128 = vector.load %arg10[%c8_59, %c8_60] : memref<16x64xf32, #tpu.memory_space<vmem>>, vector<8x8xf32>
    tpu.vector_store %arg10[%c8_59, %c8_60], %117 {strides = array<i32>} : memref<16x64xf32, #tpu.memory_space<vmem>>, vector<8x8xf32>,
    %c8_61 = arith.constant 8 : index
    %c40_62 = arith.constant 40 : index
    %129 = vector.load %arg10[%c8_61, %c40_62] : memref<16x64xf32, #tpu.memory_space<vmem>>, vector<8x8xf32>
    tpu.vector_store %arg10[%c8_61, %c40_62], %127 {strides = array<i32>} : memref<16x64xf32, #tpu.memory_space<vmem>>, vector<8x8xf32>,
    %cst_63 = arith.constant dense<0.000000e+00> : vector<8x8xf32>
    %130 = tpu.matmul %127, %116, %cst_63 {dimension_numbers = #tpu.dot_dimension_numbers<[1], [0], [0], [1], [0, 0, 1, 1], [], []>} : vector<8x8xf32>, vector<8x8xf32>, vector<8x8xf32> -> vector<8x8xf32>
    %c8_64 = arith.constant 8 : index
    %c72_65 = arith.constant 72 : index
    %131 = vector.load %arg8[%c8_64, %c72_65] : memref<16x96xf32, #tpu.memory_space<vmem>>, vector<8x8xf32>
    tpu.vector_store %arg8[%c8_64, %c72_65], %130 {strides = array<i32>} : memref<16x96xf32, #tpu.memory_space<vmem>>, vector<8x8xf32>,
    %132 = vector.extract_strided_slice %93 {offsets = [0, 16], sizes = [8, 8], strides = [1, 1]} : vector<8x32xf32> to vector<8x8xf32>
    %133 = vector.extract_strided_slice %94 {offsets = [0, 16], sizes = [8, 8], strides = [1, 1]} : vector<8x32xf32> to vector<8x8xf32>
    %134 = vector.extract_strided_slice %95 {offsets = [0, 16], sizes = [8, 8], strides = [1, 1]} : vector<8x32xf32> to vector<8x8xf32>
    %cst_66 = arith.constant dense<0.000000e+00> : vector<8x8xf32>
    %135 = tpu.matmul %132, %133, %cst_66 {dimension_numbers = #tpu.dot_dimension_numbers<[1], [1], [0], [0], [0, 0, 1, 0], [], []>} : vector<8x8xf32>, vector<8x8xf32>, vector<8x8xf32> -> vector<8x8xf32>
    %cst_67 = arith.constant dense<0xFF800000> : vector<8xf32>
    %136 = vector.multi_reduction <maximumf>, %135, %cst_67 [1] : vector<8x8xf32> to vector<8xf32>
    %137 = vector.shape_cast %136 : vector<8xf32> to vector<8x1xf32>
    %138 = vector.broadcast %137 : vector<8x1xf32> to vector<8x8xf32>
    %139 = arith.subf %135, %138 : vector<8x8xf32>
    %140 = math.exp %139 : vector<8x8xf32>
    %cst_68 = arith.constant dense<0.000000e+00> : vector<8xf32>
    %141 = vector.multi_reduction <add>, %140, %cst_68 [1] : vector<8x8xf32> to vector<8xf32>
    %142 = vector.shape_cast %141 : vector<8xf32> to vector<8x1xf32>
    %143 = tpu.reciprocal %142 : vector<8x1xf32> -> vector<8x1xf32>
    %144 = vector.broadcast %143 : vector<8x1xf32> to vector<8x8xf32>
    %145 = arith.mulf %140, %144 : vector<8x8xf32>
    %c8_69 = arith.constant 8 : index
    %c16_70 = arith.constant 16 : index
    %146 = vector.load %arg10[%c8_69, %c16_70] : memref<16x64xf32, #tpu.memory_space<vmem>>, vector<8x8xf32>
    tpu.vector_store %arg10[%c8_69, %c16_70], %135 {strides = array<i32>} : memref<16x64xf32, #tpu.memory_space<vmem>>, vector<8x8xf32>,
    %c8_71 = arith.constant 8 : index
    %c48_72 = arith.constant 48 : index
    %147 = vector.load %arg10[%c8_71, %c48_72] : memref<16x64xf32, #tpu.memory_space<vmem>>, vector<8x8xf32>
    tpu.vector_store %arg10[%c8_71, %c48_72], %145 {strides = array<i32>} : memref<16x64xf32, #tpu.memory_space<vmem>>, vector<8x8xf32>,
    %cst_73 = arith.constant dense<0.000000e+00> : vector<8x8xf32>
    %148 = tpu.matmul %145, %134, %cst_73 {dimension_numbers = #tpu.dot_dimension_numbers<[1], [0], [0], [1], [0, 0, 1, 1], [], []>} : vector<8x8xf32>, vector<8x8xf32>, vector<8x8xf32> -> vector<8x8xf32>
    %c8_74 = arith.constant 8 : index
    %c80_75 = arith.constant 80 : index
    %149 = vector.load %arg8[%c8_74, %c80_75] : memref<16x96xf32, #tpu.memory_space<vmem>>, vector<8x8xf32>
    tpu.vector_store %arg8[%c8_74, %c80_75], %148 {strides = array<i32>} : memref<16x96xf32, #tpu.memory_space<vmem>>, vector<8x8xf32>,
    %150 = vector.extract_strided_slice %93 {offsets = [0, 24], sizes = [8, 8], strides = [1, 1]} : vector<8x32xf32> to vector<8x8xf32>
    %151 = vector.extract_strided_slice %94 {offsets = [0, 24], sizes = [8, 8], strides = [1, 1]} : vector<8x32xf32> to vector<8x8xf32>
    %152 = vector.extract_strided_slice %95 {offsets = [0, 24], sizes = [8, 8], strides = [1, 1]} : vector<8x32xf32> to vector<8x8xf32>
    %cst_76 = arith.constant dense<0.000000e+00> : vector<8x8xf32>
    %153 = tpu.matmul %150, %151, %cst_76 {dimension_numbers = #tpu.dot_dimension_numbers<[1], [1], [0], [0], [0, 0, 1, 0], [], []>} : vector<8x8xf32>, vector<8x8xf32>, vector<8x8xf32> -> vector<8x8xf32>
    %cst_77 = arith.constant dense<0xFF800000> : vector<8xf32>
    %154 = vector.multi_reduction <maximumf>, %153, %cst_77 [1] : vector<8x8xf32> to vector<8xf32>
    %155 = vector.shape_cast %154 : vector<8xf32> to vector<8x1xf32>
    %156 = vector.broadcast %155 : vector<8x1xf32> to vector<8x8xf32>
    %157 = arith.subf %153, %156 : vector<8x8xf32>
    %158 = math.exp %157 : vector<8x8xf32>
    %cst_78 = arith.constant dense<0.000000e+00> : vector<8xf32>
    %159 = vector.multi_reduction <add>, %158, %cst_78 [1] : vector<8x8xf32> to vector<8xf32>
    %160 = vector.shape_cast %159 : vector<8xf32> to vector<8x1xf32>
    %161 = tpu.reciprocal %160 : vector<8x1xf32> -> vector<8x1xf32>
    %162 = vector.broadcast %161 : vector<8x1xf32> to vector<8x8xf32>
    %163 = arith.mulf %158, %162 : vector<8x8xf32>
    %c8_79 = arith.constant 8 : index
    %c24_80 = arith.constant 24 : index
    %164 = vector.load %arg10[%c8_79, %c24_80] : memref<16x64xf32, #tpu.memory_space<vmem>>, vector<8x8xf32>
    tpu.vector_store %arg10[%c8_79, %c24_80], %153 {strides = array<i32>} : memref<16x64xf32, #tpu.memory_space<vmem>>, vector<8x8xf32>,
    %c8_81 = arith.constant 8 : index
    %c56_82 = arith.constant 56 : index
    %165 = vector.load %arg10[%c8_81, %c56_82] : memref<16x64xf32, #tpu.memory_space<vmem>>, vector<8x8xf32>
    tpu.vector_store %arg10[%c8_81, %c56_82], %163 {strides = array<i32>} : memref<16x64xf32, #tpu.memory_space<vmem>>, vector<8x8xf32>,
    %cst_83 = arith.constant dense<0.000000e+00> : vector<8x8xf32>
    %166 = tpu.matmul %163, %152, %cst_83 {dimension_numbers = #tpu.dot_dimension_numbers<[1], [0], [0], [1], [0, 0, 1, 1], [], []>} : vector<8x8xf32>, vector<8x8xf32>, vector<8x8xf32> -> vector<8x8xf32>
    %c8_84 = arith.constant 8 : index
    %c88_85 = arith.constant 88 : index
    %167 = vector.load %arg8[%c8_84, %c88_85] : memref<16x96xf32, #tpu.memory_space<vmem>>, vector<8x8xf32>
    tpu.vector_store %arg8[%c8_84, %c88_85], %166 {strides = array<i32>} : memref<16x96xf32, #tpu.memory_space<vmem>>, vector<8x8xf32>,
    %c0_86 = arith.constant 0 : index
    %c64_87 = arith.constant 64 : index
    %168 = vector.load %arg8[%c0_86, %c64_87] : memref<16x96xf32, #tpu.memory_space<vmem>>, vector<16x32xf32>
    %c0_88 = arith.constant 0 : index
    %c0_89 = arith.constant 0 : index
    %169 = vector.load %arg6[%c0_88, %c0_89] : memref<32x32xf32, #tpu.memory_space<vmem>>, vector<32x32xf32>
    %cst_90 = arith.constant dense<0.000000e+00> : vector<16x32xf32>
    %170 = tpu.matmul %168, %169, %cst_90 {dimension_numbers = #tpu.dot_dimension_numbers<[1], [0], [0], [1], [0, 0, 1, 1], [], []>} : vector<16x32xf32>, vector<32x32xf32>, vector<16x32xf32> -> vector<16x32xf32>
    %c0_91 = arith.constant 0 : index
    %c0_92 = arith.constant 0 : index
    %171 = vector.load %arg7[%c0_91, %c0_92] : memref<1x32xf32, #tpu.memory_space<vmem>>, vector<1x32xf32>
    %172 = vector.broadcast %171 : vector<1x32xf32> to vector<16x32xf32>
    %173 = arith.addf %170, %172 : vector<16x32xf32>
    %174 = arith.addf %173, %0 : vector<16x32xf32>
    %c0_93 = arith.constant 0 : index
    %c0_94 = arith.constant 0 : index
    %175 = vector.load %arg8[%c0_93, %c0_94] : memref<16x96xf32, #tpu.memory_space<vmem>>, vector<16x32xf32>
    tpu.vector_store %arg8[%c0_93, %c0_94], %174 {strides = array<i32>} : memref<16x96xf32, #tpu.memory_space<vmem>>, vector<16x32xf32>,
    return
  }
}

</mosaic_0001>

<llo_original>
// kernel: multi_head_attention_forward.1
$region0: #{multi_head_attention_forward.1}
  #allocation0 [shape = 'u32[]', space=smem, size = 0x4, offset = 0x4, fixed_abs, tag = 'smem constant byte address 0x4 - core index']
  #allocation1 [shape = 'u32[144,128]{1,0:T(1,128)}', space=vmem, size = 0x12000, scoped, tag = 'internal scratch']
  %s0 = inlined_call_operand.vmem [shape: f32[16,32], index: 0, kind: input, shape index: {}]
  %s1 = inlined_call_operand.vmem [shape: f32[16,16], index: 1, kind: input, shape index: {}]
  %s2 = inlined_call_operand.hbm [shape: f32[32,32], index: 2, kind: input, shape index: {}]
  %s3 = inlined_call_operand.vmem [shape: f32[1,32], index: 3, kind: input, shape index: {}]
  %s4 = inlined_call_operand.hbm [shape: f32[16,64], index: 4, kind: input, shape index: {}]
  %s5 = inlined_call_operand.vmem [shape: f32[1,64], index: 5, kind: input, shape index: {}]
  %s6 = inlined_call_operand.hbm [shape: f32[32,32], index: 6, kind: input, shape index: {}]
  %s7 = inlined_call_operand.hbm [shape: f32[1,32], index: 7, kind: input, shape index: {}]
  %s8 = inlined_call_operand.vmem [shape: f32[16,96], index: 8, kind: output, shape index: {0}]
  %s9 = inlined_call_operand.vmem [shape: f32[16,64], index: 9, kind: output, shape index: {1}]
  %s10 = inlined_call_operand.vmem [shape: f32[16,64], index: 10, kind: output, shape index: {2}]
  %11 = xla_tuple %s8, %s9, %s10
  %s12 = sld [smem:[#allocation0]]
  $region74: #{multi_head_attention_forward.1} parent=0
    _
  %s14 = ssub.s32 1, %s12
  %s15 = scalar_select 0, %s14, %s12
  $region1: #{multi_head_attention_forward.1} parent=0
    #allocation2 [shape = 'u8[16384]{0}', space=vmem, size = 0x4000, scoped, tag = 'input window, operand 2, single buffered']
    #allocation3 [shape = 's32[1]{0}', space=sflag, size = 0x4, scoped, tag = 'scoped memory for multi_head_attention_forward.1']
    #allocation4 [shape = 'u8[8192]{0}', space=vmem, size = 0x2000, scoped, tag = 'input window, operand 4, single buffered']
    #allocation5 [shape = 's32[1]{0}', space=sflag, size = 0x4, scoped, tag = 'scoped memory for multi_head_attention_forward.1']
    #allocation6 [shape = 'u8[16384]{0}', space=vmem, size = 0x4000, scoped, tag = 'input window, operand 6, single buffered']
    #allocation7 [shape = 'u8[512]{0}', space=vmem, size = 0x400, scoped, tag = 'input window, operand 7, single buffered']
    #allocation8 [shape = 's32[1]{0}', space=sflag, size = 0x4, scoped, tag = 'scoped memory for multi_head_attention_forward.1']
    %16 = vsyncpa [#allocation3], 0
    %17 = vsyncpa [#allocation5], 0
    %18 = vsyncpa [#allocation8], 0
    // Predicated region
    $region2: #{multi_head_attention_forward.1} parent=1 // pred_check
      _
    $region3: #{multi_head_attention_forward.1} parent=1 // pred_check_branch
      %20 = sbr.rel (0) target = $region5
    $region4: #{multi_head_attention_forward.1} parent=1 // pred_region
      _
    $region5: #{multi_head_attention_forward.1} parent=1 // pred_fallthru
      _
    // Predicated region
    $region6: #{multi_head_attention_forward.1} parent=1 // pred_check
      _
    $region7: #{multi_head_attention_forward.1} parent=1 // pred_check_branch
      %22 = sbr.rel (0) target = $region9
    $region8: #{multi_head_attention_forward.1} parent=1 // pred_region
      _
    $region9: #{multi_head_attention_forward.1} parent=1 // pred_fallthru
      _
    // Predicated region
    $region10: #{multi_head_attention_forward.1} parent=1 // pred_check
      _
    $region11: #{multi_head_attention_forward.1} parent=1 // pred_check_branch
      %24 = sbr.rel (0) target = $region13
    $region12: #{multi_head_attention_forward.1} parent=1 // pred_region
      %s26 = ssub.s32 512, 512
      %27 = vsyncadd [#allocation3], %s26
      %s28 = sshll.u32 [#allocation2], 4
      %s29 = int_to_ptr.vmem [resolvable:$true] %s28
      %34 = dma.hbm_to_vmem [thread:$0]  %s2, 512, %s29, [#allocation3], 128, 128, 8
    $region13: #{multi_head_attention_forward.1} parent=1 // pred_fallthru
      _
    // Predicated region
    $region14: #{multi_head_attention_forward.1} parent=1 // pred_check
      _
    $region15: #{multi_head_attention_forward.1} parent=1 // pred_check_branch
      %36 = sbr.rel (0) target = $region17
    $region16: #{multi_head_attention_forward.1} parent=1 // pred_region
      _
    $region17: #{multi_head_attention_forward.1} parent=1 // pred_fallthru
      _
    // Predicated region
    $region18: #{multi_head_attention_forward.1} parent=1 // pred_check
      _
    $region19: #{multi_head_attention_forward.1} parent=1 // pred_check_branch
      %38 = sbr.rel (0) target = $region21
    $region20: #{multi_head_attention_forward.1} parent=1 // pred_region
      %s40 = ssub.s32 256, 256
      %41 = vsyncadd [#allocation5], %s40
      %s42 = sshll.u32 [#allocation4], 4
      %s43 = int_to_ptr.vmem [resolvable:$true] %s42
      %48 = dma.hbm_to_vmem [thread:$0]  %s4, 256, %s43, [#allocation5], 128, 128, 8
    $region21: #{multi_head_attention_forward.1} parent=1 // pred_fallthru
      _
    // Predicated region
    $region22: #{multi_head_attention_forward.1} parent=1 // pred_check
      _
    $region23: #{multi_head_attention_forward.1} parent=1 // pred_check_branch
      %50 = sbr.rel (0) target = $region25
    $region24: #{multi_head_attention_forward.1} parent=1 // pred_region
      _
    $region25: #{multi_head_attention_forward.1} parent=1 // pred_fallthru
      _
    // Predicated region
    $region26: #{multi_head_attention_forward.1} parent=1 // pred_check
      _
    $region27: #{multi_head_attention_forward.1} parent=1 // pred_check_branch
      %52 = sbr.rel (0) target = $region29
    $region28: #{multi_head_attention_forward.1} parent=1 // pred_region
      %s54 = ssub.s32 512, 512
      %55 = vsyncadd [#allocation5], %s54
      %s56 = sshll.u32 [#allocation6], 4
      %s57 = int_to_ptr.vmem [resolvable:$true] %s56
      %62 = dma.hbm_to_vmem [thread:$0]  %s6, 512, %s57, [#allocation5], 128, 128, 8
    $region29: #{multi_head_attention_forward.1} parent=1 // pred_fallthru
      _
    // Predicated region
    $region30: #{multi_head_attention_forward.1} parent=1 // pred_check
      _
    $region31: #{multi_head_attention_forward.1} parent=1 // pred_check_branch
      %64 = sbr.rel (0) target = $region33
    $region32: #{multi_head_attention_forward.1} parent=1 // pred_region
      %s66 = ssub.s32 16, 16
      %67 = vsyncadd [#allocation8], %s66
      %s69 = sshll.u32 [#allocation7], 4
      %s70 = int_to_ptr.vmem [resolvable:$true] %s69
      %72 = dma.hbm_to_vmem [thread:$0]  %s7, 16, %s70, [#allocation8]
    $region33: #{multi_head_attention_forward.1} parent=1 // pred_fallthru
      _
    // Predicated region
    $region34: #{multi_head_attention_forward.1} parent=1 // pred_check
      _
    $region35: #{multi_head_attention_forward.1} parent=1 // pred_check_branch
      %74 = sbr.rel (0) target = $region37
    $region36: #{multi_head_attention_forward.1} parent=1 // pred_region
      %75 = dma.done [#allocation3], 512
    $region37: #{multi_head_attention_forward.1} parent=1 // pred_fallthru
      _
    // Predicated region
    $region38: #{multi_head_attention_forward.1} parent=1 // pred_check
      _
    $region39: #{multi_head_attention_forward.1} parent=1 // pred_check_branch
      %77 = sbr.rel (0) target = $region41
    $region40: #{multi_head_attention_forward.1} parent=1 // pred_region
      %78 = dma.done [#allocation5], 256
    $region41: #{multi_head_attention_forward.1} parent=1 // pred_fallthru
      _
    // Predicated region
    $region42: #{multi_head_attention_forward.1} parent=1 // pred_check
      _
    $region43: #{multi_head_attention_forward.1} parent=1 // pred_check_branch
      %80 = sbr.rel (0) target = $region45
    $region44: #{multi_head_attention_forward.1} parent=1 // pred_region
      %81 = dma.done [#allocation5], 512
    $region45: #{multi_head_attention_forward.1} parent=1 // pred_fallthru
      _
    // Predicated region
    $region46: #{multi_head_attention_forward.1} parent=1 // pred_check
      _
    $region47: #{multi_head_attention_forward.1} parent=1 // pred_check_branch
      %83 = sbr.rel (0) target = $region49
    $region48: #{multi_head_attention_forward.1} parent=1 // pred_region
      %84 = dma.done [#allocation8], 16
    $region49: #{multi_head_attention_forward.1} parent=1 // pred_fallthru
      _
    %v85 = vld [vmem:[%s0] sm:$0xff]
    %v86 = vld [vmem:[%s0 + $0x8] sm:$0xff]
    %v87 = vld [vmem:[%s1] sm:$0xff]
    %v88 = vld [vmem:[%s1 + $0x8] sm:$0xff]
    %v89 = vld [vmem:[#allocation2] sm:$0xff]
    %v90 = vld [vmem:[#allocation2 + $0x8] sm:$0xff]
    %v91 = vld [vmem:[#allocation2 + $0x10] sm:$0xff]
    %v92 = vld [vmem:[#allocation2 + $0x18] sm:$0xff]
    %v93 = vld [vmem:[%s3] sm:$0x1]
    %v95 = vlaneseq
    %v96 = vshrl.u32 %v95, 7
    %v97 = vsub.s32 0, %v96
    %v98 = vrot.slane %v93, %v97
    %vm100 = vcmask 261120
    %v102 = vsel %vm100, %v85, 0
    %v105 = vsel %vm100, %v86, 0
    %107 = vmatprep.subr.mxu0 0.0
    %108 = vmatpush1.msra.mxu0 %v89
    %109 = vmatprep.subr.mxu0 0.0
    %110 = vmatpush1.msra.mxu0 %v90
    %111 = vmatprep.subr.mxu0 0.0
    %112 = vmatpush1.msra.mxu0 %v91
    %113 = vmatprep.subr.mxu0 0.0
    %114 = vmatpush1.msra.mxu0 %v92
    %115 = vmatprep.subr.mxu0 0.0
    %116 = vmatpush1.msra.mxu0 0.0
    %117 = vmatprep.subr.mxu0 0.0
    %118 = vmatpush1.msra.mxu0 0.0
    %119 = vmatprep.subr.mxu0 0.0
    %120 = vmatpush1.msra.mxu0 0.0
    %121 = vmatprep.subr.mxu0 0.0
    %122 = vmatpush1.msra.mxu0 0.0
    %123 = vmatprep.subr.mxu0 0.0
    %124 = vmatpush1.msra.mxu0 0.0
    %125 = vmatprep.subr.mxu0 0.0
    %126 = vmatpush1.msra.mxu0 0.0
    %127 = vmatprep.subr.mxu0 0.0
    %128 = vmatpush1.msra.mxu0 0.0
    %129 = vmatprep.subr.mxu0 0.0
    %130 = vmatpush1.msra.mxu0 0.0
    %131 = vmatprep.subr.mxu0 0.0
    %132 = vmatpush1.msra.mxu0 0.0
    %133 = vmatprep.subr.mxu0 0.0
    %134 = vmatpush1.msra.mxu0 0.0
    %135 = vmatprep.subr.mxu0 0.0
    %136 = vmatpush1.msra.mxu0 0.0
    %137 = vmatprep.subr.mxu0 0.0
    %138 = vmatpush1.msra.mxu0 0.0
    %139 = vmatprep.subr.mxu0 0.0
    %140 = vmatpush1.msra.mxu0 0.0
    %141 = vmatprep.subr.mxu0 0.0
    %142 = vmatpush1.msra.mxu0 0.0
    %143 = vmatprep.subr.mxu0 0.0
    %144 = vmatpush1.msra.mxu0 0.0
    %145 = vmatprep.subr.mxu0 0.0
    %146 = vmatpush1.msra.mxu0 0.0
    %147 = vmatprep.subr.mxu0 0.0
    %148 = vmatpush1.msra.mxu0 0.0
    %149 = vmatprep.subr.mxu0 0.0
    %150 = vmatpush1.msra.mxu0 0.0
    %151 = vmatprep.subr.mxu0 0.0
    %152 = vmatpush1.msra.mxu0 0.0
    %153 = vmatprep.subr.mxu0 0.0
    %154 = vmatpush1.msra.mxu0 0.0
    %155 = vmatprep.subr.mxu0 0.0
    %156 = vmatpush1.msra.mxu0 0.0
    %157 = vmatprep.subr.mxu0 0.0
    %158 = vmatpush1.msra.mxu0 0.0
    %159 = vmatprep.subr.mxu0 0.0
    %160 = vmatpush1.msra.mxu0 0.0
    %161 = vmatprep.subr.mxu0 0.0
    %162 = vmatpush1.msra.mxu0 0.0
    %163 = vmatprep.subr.mxu0 0.0
    %164 = vmatpush1.msra.mxu0 0.0
    %165 = vmatprep.subr.mxu0 0.0
    %166 = vmatpush1.msra.mxu0 0.0
    %167 = vmatprep.subr.mxu0 0.0
    %168 = vmatpush1.msra.mxu0 0.0
    %169 = vmatprep.subr.mxu0 0.0
    %170 = vmatpush1.msra.mxu0 0.0
    %171 = vmatprep.mubr.f32.mxu0 0.0
    %172 = vmatmul.mubr.f32.gmra.mrb[0].mxu0 %v102
    %v173 = vpop.f32.mrb[0].mxu0
    %v174 = vadd.f32 %v98, %v173
    %v175 = vpop.f32.mrb[0].mxu0
    %176 = vmatprep.mubr.f32.mxu0 0.0
    %177 = vmatmul.mubr.f32.gmra.mrb[0].mxu0 %v105
    %v178 = vpop.f32.mrb[0].mxu0
    %v179 = vadd.f32 %v98, %v178
    %v180 = vpop.f32.mrb[0].mxu0
    %181 = vdwg.mxu0
    %v182 = vld [vmem:[#allocation4] sm:$0xff]
    %v183 = vld [vmem:[#allocation4 + $0x8] sm:$0xff]
    %v184 = vld [vmem:[%s5] sm:$0x1]
    %v186 = vlaneseq
    %v187 = vshrl.u32 %v186, 7
    %v188 = vsub.s32 0, %v187
    %v189 = vrot.slane %v184, %v188
    %vm191 = vcmask 130048
    %v193 = vsel %vm191, %v87, 0
    %v196 = vsel %vm191, %v88, 0
    %198 = vmatprep.subr.mxu0 0.0
    %199 = vmatpush1.msra.mxu0 %v182
    %200 = vmatprep.subr.mxu0 0.0
    %201 = vmatpush1.msra.mxu0 %v183
    %202 = vmatprep.subr.mxu0 0.0
    %203 = vmatpush1.msra.mxu0 0.0
    %204 = vmatprep.subr.mxu0 0.0
    %205 = vmatpush1.msra.mxu0 0.0
    %206 = vmatprep.subr.mxu0 0.0
    %207 = vmatpush1.msra.mxu0 0.0
    %208 = vmatprep.subr.mxu0 0.0
    %209 = vmatpush1.msra.mxu0 0.0
    %210 = vmatprep.subr.mxu0 0.0
    %211 = vmatpush1.msra.mxu0 0.0
    %212 = vmatprep.subr.mxu0 0.0
    %213 = vmatpush1.msra.mxu0 0.0
    %214 = vmatprep.subr.mxu0 0.0
    %215 = vmatpush1.msra.mxu0 0.0
    %216 = vmatprep.subr.mxu0 0.0
    %217 = vmatpush1.msra.mxu0 0.0
    %218 = vmatprep.subr.mxu0 0.0
    %219 = vmatpush1.msra.mxu0 0.0
    %220 = vmatprep.subr.mxu0 0.0
    %221 = vmatpush1.msra.mxu0 0.0
    %222 = vmatprep.subr.mxu0 0.0
    %223 = vmatpush1.msra.mxu0 0.0
    %224 = vmatprep.subr.mxu0 0.0
    %225 = vmatpush1.msra.mxu0 0.0
    %226 = vmatprep.subr.mxu0 0.0
    %227 = vmatpush1.msra.mxu0 0.0
    %228 = vmatprep.subr.mxu0 0.0
    %229 = vmatpush1.msra.mxu0 0.0
    %230 = vmatprep.subr.mxu0 0.0
    %231 = vmatpush1.msra.mxu0 0.0
    %232 = vmatprep.subr.mxu0 0.0
    %233 = vmatpush1.msra.mxu0 0.0
    %234 = vmatprep.subr.mxu0 0.0
    %235 = vmatpush1.msra.mxu0 0.0
    %236 = vmatprep.subr.mxu0 0.0
    %237 = vmatpush1.msra.mxu0 0.0
    %238 = vmatprep.subr.mxu0 0.0
    %239 = vmatpush1.msra.mxu0 0.0
    %240 = vmatprep.subr.mxu0 0.0
    %241 = vmatpush1.msra.mxu0 0.0
    %242 = vmatprep.subr.mxu0 0.0
    %243 = vmatpush1.msra.mxu0 0.0
    %244 = vmatprep.subr.mxu0 0.0
    %245 = vmatpush1.msra.mxu0 0.0
    %246 = vmatprep.subr.mxu0 0.0
    %247 = vmatpush1.msra.mxu0 0.0
    %248 = vmatprep.subr.mxu0 0.0
    %249 = vmatpush1.msra.mxu0 0.0
    %250 = vmatprep.subr.mxu0 0.0
    %251 = vmatpush1.msra.mxu0 0.0
    %252 = vmatprep.subr.mxu0 0.0
    %253 = vmatpush1.msra.mxu0 0.0
    %254 = vmatprep.subr.mxu0 0.0
    %255 = vmatpush1.msra.mxu0 0.0
    %256 = vmatprep.subr.mxu0 0.0
    %257 = vmatpush1.msra.mxu0 0.0
    %258 = vmatprep.subr.mxu0 0.0
    %259 = vmatpush1.msra.mxu0 0.0
    %260 = vmatprep.subr.mxu0 0.0
    %261 = vmatpush1.msra.mxu0 0.0
    %262 = vmatprep.mubr.f32.mxu0 0.0
    %263 = vmatmul.mubr.f32.gmra.mrb[0].mxu0 %v193
    %v264 = vpop.f32.mrb[0].mxu0
    %v265 = vadd.f32 %v189, %v264
    %v266 = vpop.f32.mrb[0].mxu0
    %267 = vmatprep.mubr.f32.mxu0 0.0
    %268 = vmatmul.mubr.f32.gmra.mrb[0].mxu0 %v196
    %v269 = vpop.f32.mrb[0].mxu0
    %v270 = vadd.f32 %v189, %v269
    %v271 = vpop.f32.mrb[0].mxu0
    %272 = vdwg.mxu0
    %vm273 = vcmask 523264
    %274 = vst.msk [vmem:[%s9] sm:$0xff] %vm273, %v265
    %275 = vst.msk [vmem:[%s9 + $0x8] sm:$0xff] %vm273, %v270
    %278 = vrot.lane.b32.xlu0 %v174, 32
    %v279 = vpop.permute.xlu0 %278
    %280 = vrot.lane.b32.xlu0 %v179, 32
    %v281 = vpop.permute.xlu0 %280
    %vm284 = vcmask 523520
    %285 = vst.msk [vmem:[%s8] sm:$0xff] %vm284, %v279
    %286 = vst.msk [vmem:[%s8 + $0x8] sm:$0xff] %vm284, %v281
    %v287 = vmul.f32 %v174, 0.35355338
    %v288 = vmul.f32 %v179, 0.35355338
    %vm289 = vcmask 64512
    %v291 = vsel %vm289, %v287, 0
    %v294 = vsel %vm289, %v265, 0
    %296 = vmatprep.subr.mxu0 0.0
    %297 = vmatpush1.xpose.msra.mxu0 %v294
    %298 = vmatprep.subr.mxu0 0.0
    %299 = vmatpush1.xpose.msra.mxu0 0.0
    %300 = vmatprep.subr.mxu0 0.0
    %301 = vmatpush1.xpose.msra.mxu0 0.0
    %302 = vmatprep.subr.mxu0 0.0
    %303 = vmatpush1.xpose.msra.mxu0 0.0
    %304 = vmatprep.subr.mxu0 0.0
    %305 = vmatpush1.xpose.msra.mxu0 0.0
    %306 = vmatprep.subr.mxu0 0.0
    %307 = vmatpush1.xpose.msra.mxu0 0.0
    %308 = vmatprep.subr.mxu0 0.0
    %309 = vmatpush1.xpose.msra.mxu0 0.0
    %310 = vmatprep.subr.mxu0 0.0
    %311 = vmatpush1.xpose.msra.mxu0 0.0
    %312 = vmatprep.subr.mxu0 0.0
    %313 = vmatpush1.xpose.msra.mxu0 0.0
    %314 = vmatprep.subr.mxu0 0.0
    %315 = vmatpush1.xpose.msra.mxu0 0.0
    %316 = vmatprep.subr.mxu0 0.0
    %317 = vmatpush1.xpose.msra.mxu0 0.0
    %318 = vmatprep.subr.mxu0 0.0
    %319 = vmatpush1.xpose.msra.mxu0 0.0
    %320 = vmatprep.subr.mxu0 0.0
    %321 = vmatpush1.xpose.msra.mxu0 0.0
    %322 = vmatprep.subr.mxu0 0.0
    %323 = vmatpush1.xpose.msra.mxu0 0.0
    %324 = vmatprep.subr.mxu0 0.0
    %325 = vmatpush1.xpose.msra.mxu0 0.0
    %326 = vmatprep.subr.mxu0 0.0
    %327 = vmatpush1.xpose.msra.mxu0 0.0
    %328 = vmatprep.subr.mxu0 0.0
    %329 = vmatpush1.xpose.msra.mxu0 0.0
    %330 = vmatprep.subr.mxu0 0.0
    %331 = vmatpush1.xpose.msra.mxu0 0.0
    %332 = vmatprep.subr.mxu0 0.0
    %333 = vmatpush1.xpose.msra.mxu0 0.0
    %334 = vmatprep.subr.mxu0 0.0
    %335 = vmatpush1.xpose.msra.mxu0 0.0
    %336 = vmatprep.subr.mxu0 0.0
    %337 = vmatpush1.xpose.msra.mxu0 0.0
    %338 = vmatprep.subr.mxu0 0.0
    %339 = vmatpush1.xpose.msra.mxu0 0.0
    %340 = vmatprep.subr.mxu0 0.0
    %341 = vmatpush1.xpose.msra.mxu0 0.0
    %342 = vmatprep.subr.mxu0 0.0
    %343 = vmatpush1.xpose.msra.mxu0 0.0
    %344 = vmatprep.subr.mxu0 0.0
    %345 = vmatpush1.xpose.msra.mxu0 0.0
    %346 = vmatprep.subr.mxu0 0.0
    %347 = vmatpush1.xpose.msra.mxu0 0.0
    %348 = vmatprep.subr.mxu0 0.0
    %349 = vmatpush1.xpose.msra.mxu0 0.0
    %350 = vmatprep.subr.mxu0 0.0
    %351 = vmatpush1.xpose.msra.mxu0 0.0
    %352 = vmatprep.subr.mxu0 0.0
    %353 = vmatpush1.xpose.msra.mxu0 0.0
    %354 = vmatprep.subr.mxu0 0.0
    %355 = vmatpush1.xpose.msra.mxu0 0.0
    %356 = vmatprep.subr.mxu0 0.0
    %357 = vmatpush1.xpose.msra.mxu0 0.0
    %358 = vmatprep.subr.mxu0 0.0
    %359 = vmatpush1.xpose.msra.mxu0 0.0
    %360 = vmatprep.mubr.f32.mxu0 0.0
    %361 = vmatmul.mubr.f32.gmra.mrb[0].mxu0 %v291
    %v362 = vpop.f32.mrb[0].mxu0
    %v363 = vadd.f32 0.0, %v362
    %v364 = vpop.f32.mrb[0].mxu0
    %365 = vdwg.mxu0
    %v366 = vsel %vm289, %v363, -inf
    %367 = vmax.xlane.f32.xlu0 %v366
    %v368 = vpop.xlane.xlu0 %367
    %v369 = vsub.f32 %v363, %v368
    %v370 = vmul.f32 %v369, 1.442695
    %v371 = vpow.pop %v370
    %v372 = vsel %vm289, %v371, 0.0
    %373 = vadd.xlane.f32.xlu0 %v372
    %v374 = vpop.xlane.xlu0 %373
    %v375 = vrcp.pop %v374
    %v376 = vmul.f32 %v371, %v375
    %377 = vst.msk [vmem:[%s10] sm:$0xff] %vm289, %v363
    %379 = vrot.lane.b32.xlu0 %v376, 32
    %v380 = vpop.permute.xlu0 %379
    %vm382 = vcmask 326912
    %383 = vst.msk [vmem:[%s10] sm:$0xff] %vm382, %v380
    %384 = vrot.lane.b32.xlu0 %v265, 96
    %v385 = vpop.permute.xlu0 %384
    %v387 = vsel %vm289, %v376, 0
    %389 = vmatprep.subr.mxu0 0.0
    %390 = vmatpush1.msra.mxu0 %v385
    %391 = vmatprep.subr.mxu0 0.0
    %392 = vmatpush1.msra.mxu0 0.0
    %393 = vmatprep.subr.mxu0 0.0
    %394 = vmatpush1.msra.mxu0 0.0
    %395 = vmatprep.subr.mxu0 0.0
    %396 = vmatpush1.msra.mxu0 0.0
    %397 = vmatprep.subr.mxu0 0.0
    %398 = vmatpush1.msra.mxu0 0.0
    %399 = vmatprep.subr.mxu0 0.0
    %400 = vmatpush1.msra.mxu0 0.0
    %401 = vmatprep.subr.mxu0 0.0
    %402 = vmatpush1.msra.mxu0 0.0
    %403 = vmatprep.subr.mxu0 0.0
    %404 = vmatpush1.msra.mxu0 0.0
    %405 = vmatprep.subr.mxu0 0.0
    %406 = vmatpush1.msra.mxu0 0.0
    %407 = vmatprep.subr.mxu0 0.0
    %408 = vmatpush1.msra.mxu0 0.0
    %409 = vmatprep.subr.mxu0 0.0
    %410 = vmatpush1.msra.mxu0 0.0
    %411 = vmatprep.subr.mxu0 0.0
    %412 = vmatpush1.msra.mxu0 0.0
    %413 = vmatprep.subr.mxu0 0.0
    %414 = vmatpush1.msra.mxu0 0.0
    %415 = vmatprep.subr.mxu0 0.0
    %416 = vmatpush1.msra.mxu0 0.0
    %417 = vmatprep.subr.mxu0 0.0
    %418 = vmatpush1.msra.mxu0 0.0
    %419 = vmatprep.subr.mxu0 0.0
    %420 = vmatpush1.msra.mxu0 0.0
    %421 = vmatprep.subr.mxu0 0.0
    %422 = vmatpush1.msra.mxu0 0.0
    %423 = vmatprep.subr.mxu0 0.0
    %424 = vmatpush1.msra.mxu0 0.0
    %425 = vmatprep.subr.mxu0 0.0
    %426 = vmatpush1.msra.mxu0 0.0
    %427 = vmatprep.subr.mxu0 0.0
    %428 = vmatpush1.msra.mxu0 0.0
    %429 = vmatprep.subr.mxu0 0.0
    %430 = vmatpush1.msra.mxu0 0.0
    %431 = vmatprep.subr.mxu0 0.0
    %432 = vmatpush1.msra.mxu0 0.0
    %433 = vmatprep.subr.mxu0 0.0
    %434 = vmatpush1.msra.mxu0 0.0
    %435 = vmatprep.subr.mxu0 0.0
    %436 = vmatpush1.msra.mxu0 0.0
    %437 = vmatprep.subr.mxu0 0.0
    %438 = vmatpush1.msra.mxu0 0.0
    %439 = vmatprep.subr.mxu0 0.0
    %440 = vmatpush1.msra.mxu0 0.0
    %441 = vmatprep.subr.mxu0 0.0
    %442 = vmatpush1.msra.mxu0 0.0
    %443 = vmatprep.subr.mxu0 0.0
    %444 = vmatpush1.msra.mxu0 0.0
    %445 = vmatprep.subr.mxu0 0.0
    %446 = vmatpush1.msra.mxu0 0.0
    %447 = vmatprep.subr.mxu0 0.0
    %448 = vmatpush1.msra.mxu0 0.0
    %449 = vmatprep.subr.mxu0 0.0
    %450 = vmatpush1.msra.mxu0 0.0
    %451 = vmatprep.subr.mxu0 0.0
    %452 = vmatpush1.msra.mxu0 0.0
    %453 = vmatprep.mubr.f32.mxu0 0.0
    %454 = vmatmul.mubr.f32.gmra.mrb[0].mxu0 %v387
    %v455 = vpop.f32.mrb[0].mxu0
    %v456 = vadd.f32 0.0, %v455
    %v457 = vpop.f32.mrb[0].mxu0
    %458 = vdwg.mxu0
    %460 = vrot.lane.b32.xlu0 %v456, 64
    %v461 = vpop.permute.xlu0 %460
    %vm463 = vcmask 589312
    %464 = vst.msk [vmem:[%s8] sm:$0xff] %vm463, %v461
    %465 = vrot.lane.b32.xlu0 %v287, 120
    %v466 = vpop.permute.xlu0 %465
    %467 = vrot.lane.b32.xlu0 %v265, 120
    %v468 = vpop.permute.xlu0 %467
    %v469 = vsel %vm289, %v466, 0
    %v471 = vsel %vm289, %v468, 0
    %473 = vmatprep.subr.mxu0 0.0
    %474 = vmatpush1.xpose.msra.mxu0 %v471
    %475 = vmatprep.subr.mxu0 0.0
    %476 = vmatpush1.xpose.msra.mxu0 0.0
    %477 = vmatprep.subr.mxu0 0.0
    %478 = vmatpush1.xpose.msra.mxu0 0.0
    %479 = vmatprep.subr.mxu0 0.0
    %480 = vmatpush1.xpose.msra.mxu0 0.0
    %481 = vmatprep.subr.mxu0 0.0
    %482 = vmatpush1.xpose.msra.mxu0 0.0
    %483 = vmatprep.subr.mxu0 0.0
    %484 = vmatpush1.xpose.msra.mxu0 0.0
    %485 = vmatprep.subr.mxu0 0.0
    %486 = vmatpush1.xpose.msra.mxu0 0.0
    %487 = vmatprep.subr.mxu0 0.0
    %488 = vmatpush1.xpose.msra.mxu0 0.0
    %489 = vmatprep.subr.mxu0 0.0
    %490 = vmatpush1.xpose.msra.mxu0 0.0
    %491 = vmatprep.subr.mxu0 0.0
    %492 = vmatpush1.xpose.msra.mxu0 0.0
    %493 = vmatprep.subr.mxu0 0.0
    %494 = vmatpush1.xpose.msra.mxu0 0.0
    %495 = vmatprep.subr.mxu0 0.0
    %496 = vmatpush1.xpose.msra.mxu0 0.0
    %497 = vmatprep.subr.mxu0 0.0
    %498 = vmatpush1.xpose.msra.mxu0 0.0
    %499 = vmatprep.subr.mxu0 0.0
    %500 = vmatpush1.xpose.msra.mxu0 0.0
    %501 = vmatprep.subr.mxu0 0.0
    %502 = vmatpush1.xpose.msra.mxu0 0.0
    %503 = vmatprep.subr.mxu0 0.0
    %504 = vmatpush1.xpose.msra.mxu0 0.0
    %505 = vmatprep.subr.mxu0 0.0
    %506 = vmatpush1.xpose.msra.mxu0 0.0
    %507 = vmatprep.subr.mxu0 0.0
    %508 = vmatpush1.xpose.msra.mxu0 0.0
    %509 = vmatprep.subr.mxu0 0.0
    %510 = vmatpush1.xpose.msra.mxu0 0.0
    %511 = vmatprep.subr.mxu0 0.0
    %512 = vmatpush1.xpose.msra.mxu0 0.0
    %513 = vmatprep.subr.mxu0 0.0
    %514 = vmatpush1.xpose.msra.mxu0 0.0
    %515 = vmatprep.subr.mxu0 0.0
    %516 = vmatpush1.xpose.msra.mxu0 0.0
    %517 = vmatprep.subr.mxu0 0.0
    %518 = vmatpush1.xpose.msra.mxu0 0.0
    %519 = vmatprep.subr.mxu0 0.0
    %520 = vmatpush1.xpose.msra.mxu0 0.0
    %521 = vmatprep.subr.mxu0 0.0
    %522 = vmatpush1.xpose.msra.mxu0 0.0
    %523 = vmatprep.subr.mxu0 0.0
    %524 = vmatpush1.xpose.msra.mxu0 0.0
    %525 = vmatprep.subr.mxu0 0.0
    %526 = vmatpush1.xpose.msra.mxu0 0.0
    %527 = vmatprep.subr.mxu0 0.0
    %528 = vmatpush1.xpose.msra.mxu0 0.0
    %529 = vmatprep.subr.mxu0 0.0
    %530 = vmatpush1.xpose.msra.mxu0 0.0
    %531 = vmatprep.subr.mxu0 0.0
    %532 = vmatpush1.xpose.msra.mxu0 0.0
    %533 = vmatprep.subr.mxu0 0.0
    %534 = vmatpush1.xpose.msra.mxu0 0.0
    %535 = vmatprep.subr.mxu0 0.0
    %536 = vmatpush1.xpose.msra.mxu0 0.0
    %537 = vmatprep.mubr.f32.mxu0 0.0
    %538 = vmatmul.mubr.f32.gmra.mrb[0].mxu0 %v469
    %v539 = vpop.f32.mrb[0].mxu0
    %v540 = vadd.f32 0.0, %v539
    %v541 = vpop.f32.mrb[0].mxu0
    %542 = vdwg.mxu0
    %v543 = vsel %vm289, %v540, -inf
    %544 = vmax.xlane.f32.xlu0 %v543
    %v545 = vpop.xlane.xlu0 %544
    %v546 = vsub.f32 %v540, %v545
    %v547 = vmul.f32 %v546, 1.442695
    %v548 = vpow.pop %v547
    %v549 = vsel %vm289, %v548, 0.0
    %550 = vadd.xlane.f32.xlu0 %v549
    %v551 = vpop.xlane.xlu0 %550
    %v552 = vrcp.pop %v551
    %v553 = vmul.f32 %v548, %v552
    %555 = vrot.lane.b32.xlu0 %v540, 8
    %v556 = vpop.permute.xlu0 %555
    %vm558 = vcmask 130112
    %559 = vst.msk [vmem:[%s10] sm:$0xff] %vm558, %v556
    %561 = vrot.lane.b32.xlu0 %v553, 40
    %v562 = vpop.permute.xlu0 %561
    %vm564 = vcmask 392512
    %565 = vst.msk [vmem:[%s10] sm:$0xff] %vm564, %v562
    %566 = vrot.lane.b32.xlu0 %v265, 88
    %v567 = vpop.permute.xlu0 %566
    %v569 = vsel %vm289, %v553, 0
    %571 = vmatprep.subr.mxu0 0.0
    %572 = vmatpush1.msra.mxu0 %v567
    %573 = vmatprep.subr.mxu0 0.0
    %574 = vmatpush1.msra.mxu0 0.0
    %575 = vmatprep.subr.mxu0 0.0
    %576 = vmatpush1.msra.mxu0 0.0
    %577 = vmatprep.subr.mxu0 0.0
    %578 = vmatpush1.msra.mxu0 0.0
    %579 = vmatprep.subr.mxu0 0.0
    %580 = vmatpush1.msra.mxu0 0.0
    %581 = vmatprep.subr.mxu0 0.0
    %582 = vmatpush1.msra.mxu0 0.0
    %583 = vmatprep.subr.mxu0 0.0
    %584 = vmatpush1.msra.mxu0 0.0
    %585 = vmatprep.subr.mxu0 0.0
    %586 = vmatpush1.msra.mxu0 0.0
    %587 = vmatprep.subr.mxu0 0.0
    %588 = vmatpush1.msra.mxu0 0.0
    %589 = vmatprep.subr.mxu0 0.0
    %590 = vmatpush1.msra.mxu0 0.0
    %591 = vmatprep.subr.mxu0 0.0
    %592 = vmatpush1.msra.mxu0 0.0
    %593 = vmatprep.subr.mxu0 0.0
    %594 = vmatpush1.msra.mxu0 0.0
    %595 = vmatprep.subr.mxu0 0.0
    %596 = vmatpush1.msra.mxu0 0.0
    %597 = vmatprep.subr.mxu0 0.0
    %598 = vmatpush1.msra.mxu0 0.0
    %599 = vmatprep.subr.mxu0 0.0
    %600 = vmatpush1.msra.mxu0 0.0
    %601 = vmatprep.subr.mxu0 0.0
    %602 = vmatpush1.msra.mxu0 0.0
    %603 = vmatprep.subr.mxu0 0.0
    %604 = vmatpush1.msra.mxu0 0.0
    %605 = vmatprep.subr.mxu0 0.0
    %606 = vmatpush1.msra.mxu0 0.0
    %607 = vmatprep.subr.mxu0 0.0
    %608 = vmatpush1.msra.mxu0 0.0
    %609 = vmatprep.subr.mxu0 0.0
    %610 = vmatpush1.msra.mxu0 0.0
    %611 = vmatprep.subr.mxu0 0.0
    %612 = vmatpush1.msra.mxu0 0.0
    %613 = vmatprep.subr.mxu0 0.0
    %614 = vmatpush1.msra.mxu0 0.0
    %615 = vmatprep.subr.mxu0 0.0
    %616 = vmatpush1.msra.mxu0 0.0
    %617 = vmatprep.subr.mxu0 0.0
    %618 = vmatpush1.msra.mxu0 0.0
    %619 = vmatprep.subr.mxu0 0.0
    %620 = vmatpush1.msra.mxu0 0.0
    %621 = vmatprep.subr.mxu0 0.0
    %622 = vmatpush1.msra.mxu0 0.0
    %623 = vmatprep.subr.mxu0 0.0
    %624 = vmatpush1.msra.mxu0 0.0
    %625 = vmatprep.subr.mxu0 0.0
    %626 = vmatpush1.msra.mxu0 0.0
    %627 = vmatprep.subr.mxu0 0.0
    %628 = vmatpush1.msra.mxu0 0.0
    %629 = vmatprep.subr.mxu0 0.0
    %630 = vmatpush1.msra.mxu0 0.0
    %631 = vmatprep.subr.mxu0 0.0
    %632 = vmatpush1.msra.mxu0 0.0
    %633 = vmatprep.subr.mxu0 0.0
    %634 = vmatpush1.msra.mxu0 0.0
    %635 = vmatprep.mubr.f32.mxu0 0.0
    %636 = vmatmul.mubr.f32.gmra.mrb[0].mxu0 %v569
    %v637 = vpop.f32.mrb[0].mxu0
    %v638 = vadd.f32 0.0, %v637
    %v639 = vpop.f32.mrb[0].mxu0
    %640 = vdwg.mxu0
    %642 = vrot.lane.b32.xlu0 %v638, 72
    %v643 = vpop.permute.xlu0 %642
    %vm645 = vcmask 654912
    %646 = vst.msk [vmem:[%s8] sm:$0xff] %vm645, %v643
    %647 = vrot.lane.b32.xlu0 %v287, 112
    %v648 = vpop.permute.xlu0 %647
    %649 = vrot.lane.b32.xlu0 %v265, 112
    %v650 = vpop.permute.xlu0 %649
    %v651 = vsel %vm289, %v648, 0
    %v653 = vsel %vm289, %v650, 0
    %655 = vmatprep.subr.mxu0 0.0
    %656 = vmatpush1.xpose.msra.mxu0 %v653
    %657 = vmatprep.subr.mxu0 0.0
    %658 = vmatpush1.xpose.msra.mxu0 0.0
    %659 = vmatprep.subr.mxu0 0.0
    %660 = vmatpush1.xpose.msra.mxu0 0.0
    %661 = vmatprep.subr.mxu0 0.0
    %662 = vmatpush1.xpose.msra.mxu0 0.0
    %663 = vmatprep.subr.mxu0 0.0
    %664 = vmatpush1.xpose.msra.mxu0 0.0
    %665 = vmatprep.subr.mxu0 0.0
    %666 = vmatpush1.xpose.msra.mxu0 0.0
    %667 = vmatprep.subr.mxu0 0.0
    %668 = vmatpush1.xpose.msra.mxu0 0.0
    %669 = vmatprep.subr.mxu0 0.0
    %670 = vmatpush1.xpose.msra.mxu0 0.0
    %671 = vmatprep.subr.mxu0 0.0
    %672 = vmatpush1.xpose.msra.mxu0 0.0
    %673 = vmatprep.subr.mxu0 0.0
    %674 = vmatpush1.xpose.msra.mxu0 0.0
    %675 = vmatprep.subr.mxu0 0.0
    %676 = vmatpush1.xpose.msra.mxu0 0.0
    %677 = vmatprep.subr.mxu0 0.0
    %678 = vmatpush1.xpose.msra.mxu0 0.0
    %679 = vmatprep.subr.mxu0 0.0
    %680 = vmatpush1.xpose.msra.mxu0 0.0
    %681 = vmatprep.subr.mxu0 0.0
    %682 = vmatpush1.xpose.msra.mxu0 0.0
    %683 = vmatprep.subr.mxu0 0.0
    %684 = vmatpush1.xpose.msra.mxu0 0.0
    %685 = vmatprep.subr.mxu0 0.0
    %686 = vmatpush1.xpose.msra.mxu0 0.0
    %687 = vmatprep.subr.mxu0 0.0
    %688 = vmatpush1.xpose.msra.mxu0 0.0
    %689 = vmatprep.subr.mxu0 0.0
    %690 = vmatpush1.xpose.msra.mxu0 0.0
    %691 = vmatprep.subr.mxu0 0.0
    %692 = vmatpush1.xpose.msra.mxu0 0.0
    %693 = vmatprep.subr.mxu0 0.0
    %694 = vmatpush1.xpose.msra.mxu0 0.0
    %695 = vmatprep.subr.mxu0 0.0
    %696 = vmatpush1.xpose.msra.mxu0 0.0
    %697 = vmatprep.subr.mxu0 0.0
    %698 = vmatpush1.xpose.msra.mxu0 0.0
    %699 = vmatprep.subr.mxu0 0.0
    %700 = vmatpush1.xpose.msra.mxu0 0.0
    %701 = vmatprep.subr.mxu0 0.0
    %702 = vmatpush1.xpose.msra.mxu0 0.0
    %703 = vmatprep.subr.mxu0 0.0
    %704 = vmatpush1.xpose.msra.mxu0 0.0
    %705 = vmatprep.subr.mxu0 0.0
    %706 = vmatpush1.xpose.msra.mxu0 0.0
    %707 = vmatprep.subr.mxu0 0.0
    %708 = vmatpush1.xpose.msra.mxu0 0.0
    %709 = vmatprep.subr.mxu0 0.0
    %710 = vmatpush1.xpose.msra.mxu0 0.0
    %711 = vmatprep.subr.mxu0 0.0
    %712 = vmatpush1.xpose.msra.mxu0 0.0
    %713 = vmatprep.subr.mxu0 0.0
    %714 = vmatpush1.xpose.msra.mxu0 0.0
    %715 = vmatprep.subr.mxu0 0.0
    %716 = vmatpush1.xpose.msra.mxu0 0.0
    %717 = vmatprep.subr.mxu0 0.0
    %718 = vmatpush1.xpose.msra.mxu0 0.0
    %719 = vmatprep.mubr.f32.mxu0 0.0
    %720 = vmatmul.mubr.f32.gmra.mrb[0].mxu0 %v651
    %v721 = vpop.f32.mrb[0].mxu0
    %v722 = vadd.f32 0.0, %v721
    %v723 = vpop.f32.mrb[0].mxu0
    %724 = vdwg.mxu0
    %v725 = vsel %vm289, %v722, -inf
    %726 = vmax.xlane.f32.xlu0 %v725
    %v727 = vpop.xlane.xlu0 %726
    %v728 = vsub.f32 %v722, %v727
    %v729 = vmul.f32 %v728, 1.442695
    %v730 = vpow.pop %v729
    %v731 = vsel %vm289, %v730, 0.0
    %732 = vadd.xlane.f32.xlu0 %v731
    %v733 = vpop.xlane.xlu0 %732
    %v734 = vrcp.pop %v733
    %v735 = vmul.f32 %v730, %v734
    %737 = vrot.lane.b32.xlu0 %v722, 16
    %v738 = vpop.permute.xlu0 %737
    %vm740 = vcmask 195712
    %741 = vst.msk [vmem:[%s10] sm:$0xff] %vm740, %v738
    %743 = vrot.lane.b32.xlu0 %v735, 48
    %v744 = vpop.permute.xlu0 %743
    %vm746 = vcmask 458112
    %747 = vst.msk [vmem:[%s10] sm:$0xff] %vm746, %v744
    %748 = vrot.lane.b32.xlu0 %v265, 80
    %v749 = vpop.permute.xlu0 %748
    %v751 = vsel %vm289, %v735, 0
    %753 = vmatprep.subr.mxu0 0.0
    %754 = vmatpush1.msra.mxu0 %v749
    %755 = vmatprep.subr.mxu0 0.0
    %756 = vmatpush1.msra.mxu0 0.0
    %757 = vmatprep.subr.mxu0 0.0
    %758 = vmatpush1.msra.mxu0 0.0
    %759 = vmatprep.subr.mxu0 0.0
    %760 = vmatpush1.msra.mxu0 0.0
    %761 = vmatprep.subr.mxu0 0.0
    %762 = vmatpush1.msra.mxu0 0.0
    %763 = vmatprep.subr.mxu0 0.0
    %764 = vmatpush1.msra.mxu0 0.0
    %765 = vmatprep.subr.mxu0 0.0
    %766 = vmatpush1.msra.mxu0 0.0
    %767 = vmatprep.subr.mxu0 0.0
    %768 = vmatpush1.msra.mxu0 0.0
    %769 = vmatprep.subr.mxu0 0.0
    %770 = vmatpush1.msra.mxu0 0.0
    %771 = vmatprep.subr.mxu0 0.0
    %772 = vmatpush1.msra.mxu0 0.0
    %773 = vmatprep.subr.mxu0 0.0
    %774 = vmatpush1.msra.mxu0 0.0
    %775 = vmatprep.subr.mxu0 0.0
    %776 = vmatpush1.msra.mxu0 0.0
    %777 = vmatprep.subr.mxu0 0.0
    %778 = vmatpush1.msra.mxu0 0.0
    %779 = vmatprep.subr.mxu0 0.0
    %780 = vmatpush1.msra.mxu0 0.0
    %781 = vmatprep.subr.mxu0 0.0
    %782 = vmatpush1.msra.mxu0 0.0
    %783 = vmatprep.subr.mxu0 0.0
    %784 = vmatpush1.msra.mxu0 0.0
    %785 = vmatprep.subr.mxu0 0.0
    %786 = vmatpush1.msra.mxu0 0.0
    %787 = vmatprep.subr.mxu0 0.0
    %788 = vmatpush1.msra.mxu0 0.0
    %789 = vmatprep.subr.mxu0 0.0
    %790 = vmatpush1.msra.mxu0 0.0
    %791 = vmatprep.subr.mxu0 0.0
    %792 = vmatpush1.msra.mxu0 0.0
    %793 = vmatprep.subr.mxu0 0.0
    %794 = vmatpush1.msra.mxu0 0.0
    %795 = vmatprep.subr.mxu0 0.0
    %796 = vmatpush1.msra.mxu0 0.0
    %797 = vmatprep.subr.mxu0 0.0
    %798 = vmatpush1.msra.mxu0 0.0
    %799 = vmatprep.subr.mxu0 0.0
    %800 = vmatpush1.msra.mxu0 0.0
    %801 = vmatprep.subr.mxu0 0.0
    %802 = vmatpush1.msra.mxu0 0.0
    %803 = vmatprep.subr.mxu0 0.0
    %804 = vmatpush1.msra.mxu0 0.0
    %805 = vmatprep.subr.mxu0 0.0
    %806 = vmatpush1.msra.mxu0 0.0
    %807 = vmatprep.subr.mxu0 0.0
    %808 = vmatpush1.msra.mxu0 0.0
    %809 = vmatprep.subr.mxu0 0.0
    %810 = vmatpush1.msra.mxu0 0.0
    %811 = vmatprep.subr.mxu0 0.0
    %812 = vmatpush1.msra.mxu0 0.0
    %813 = vmatprep.subr.mxu0 0.0
    %814 = vmatpush1.msra.mxu0 0.0
    %815 = vmatprep.subr.mxu0 0.0
    %816 = vmatpush1.msra.mxu0 0.0
    %817 = vmatprep.mubr.f32.mxu0 0.0
    %818 = vmatmul.mubr.f32.gmra.mrb[0].mxu0 %v751
    %v819 = vpop.f32.mrb[0].mxu0
    %v820 = vadd.f32 0.0, %v819
    %v821 = vpop.f32.mrb[0].mxu0
    %822 = vdwg.mxu0
    %824 = vrot.lane.b32.xlu0 %v820, 80
    %v825 = vpop.permute.xlu0 %824
    %vm827 = vcmask 720512
    %828 = vst.msk [vmem:[%s8] sm:$0xff] %vm827, %v825
    %829 = vrot.lane.b32.xlu0 %v287, 104
    %v830 = vpop.permute.xlu0 %829
    %831 = vrot.lane.b32.xlu0 %v265, 104
    %v832 = vpop.permute.xlu0 %831
    %v833 = vsel %vm289, %v830, 0
    %v835 = vsel %vm289, %v832, 0
    %837 = vmatprep.subr.mxu0 0.0
    %838 = vmatpush1.xpose.msra.mxu0 %v835
    %839 = vmatprep.subr.mxu0 0.0
    %840 = vmatpush1.xpose.msra.mxu0 0.0
    %841 = vmatprep.subr.mxu0 0.0
    %842 = vmatpush1.xpose.msra.mxu0 0.0
    %843 = vmatprep.subr.mxu0 0.0
    %844 = vmatpush1.xpose.msra.mxu0 0.0
    %845 = vmatprep.subr.mxu0 0.0
    %846 = vmatpush1.xpose.msra.mxu0 0.0
    %847 = vmatprep.subr.mxu0 0.0
    %848 = vmatpush1.xpose.msra.mxu0 0.0
    %849 = vmatprep.subr.mxu0 0.0
    %850 = vmatpush1.xpose.msra.mxu0 0.0
    %851 = vmatprep.subr.mxu0 0.0
    %852 = vmatpush1.xpose.msra.mxu0 0.0
    %853 = vmatprep.subr.mxu0 0.0
    %854 = vmatpush1.xpose.msra.mxu0 0.0
    %855 = vmatprep.subr.mxu0 0.0
    %856 = vmatpush1.xpose.msra.mxu0 0.0
    %857 = vmatprep.subr.mxu0 0.0
    %858 = vmatpush1.xpose.msra.mxu0 0.0
    %859 = vmatprep.subr.mxu0 0.0
    %860 = vmatpush1.xpose.msra.mxu0 0.0
    %861 = vmatprep.subr.mxu0 0.0
    %862 = vmatpush1.xpose.msra.mxu0 0.0
    %863 = vmatprep.subr.mxu0 0.0
    %864 = vmatpush1.xpose.msra.mxu0 0.0
    %865 = vmatprep.subr.mxu0 0.0
    %866 = vmatpush1.xpose.msra.mxu0 0.0
    %867 = vmatprep.subr.mxu0 0.0
    %868 = vmatpush1.xpose.msra.mxu0 0.0
    %869 = vmatprep.subr.mxu0 0.0
    %870 = vmatpush1.xpose.msra.mxu0 0.0
    %871 = vmatprep.subr.mxu0 0.0
    %872 = vmatpush1.xpose.msra.mxu0 0.0
    %873 = vmatprep.subr.mxu0 0.0
    %874 = vmatpush1.xpose.msra.mxu0 0.0
    %875 = vmatprep.subr.mxu0 0.0
    %876 = vmatpush1.xpose.msra.mxu0 0.0
    %877 = vmatprep.subr.mxu0 0.0
    %878 = vmatpush1.xpose.msra.mxu0 0.0
    %879 = vmatprep.subr.mxu0 0.0
    %880 = vmatpush1.xpose.msra.mxu0 0.0
    %881 = vmatprep.subr.mxu0 0.0
    %882 = vmatpush1.xpose.msra.mxu0 0.0
    %883 = vmatprep.subr.mxu0 0.0
    %884 = vmatpush1.xpose.msra.mxu0 0.0
    %885 = vmatprep.subr.mxu0 0.0
    %886 = vmatpush1.xpose.msra.mxu0 0.0
    %887 = vmatprep.subr.mxu0 0.0
    %888 = vmatpush1.xpose.msra.mxu0 0.0
    %889 = vmatprep.subr.mxu0 0.0
    %890 = vmatpush1.xpose.msra.mxu0 0.0
    %891 = vmatprep.subr.mxu0 0.0
    %892 = vmatpush1.xpose.msra.mxu0 0.0
    %893 = vmatprep.subr.mxu0 0.0
    %894 = vmatpush1.xpose.msra.mxu0 0.0
    %895 = vmatprep.subr.mxu0 0.0
    %896 = vmatpush1.xpose.msra.mxu0 0.0
    %897 = vmatprep.subr.mxu0 0.0
    %898 = vmatpush1.xpose.msra.mxu0 0.0
    %899 = vmatprep.subr.mxu0 0.0
    %900 = vmatpush1.xpose.msra.mxu0 0.0
    %901 = vmatprep.mubr.f32.mxu0 0.0
    %902 = vmatmul.mubr.f32.gmra.mrb[0].mxu0 %v833
    %v903 = vpop.f32.mrb[0].mxu0
    %v904 = vadd.f32 0.0, %v903
    %v905 = vpop.f32.mrb[0].mxu0
    %906 = vdwg.mxu0
    %v907 = vsel %vm289, %v904, -inf
    %908 = vmax.xlane.f32.xlu0 %v907
    %v909 = vpop.xlane.xlu0 %908
    %v910 = vsub.f32 %v904, %v909
    %v911 = vmul.f32 %v910, 1.442695
    %v912 = vpow.pop %v911
    %v913 = vsel %vm289, %v912, 0.0
    %914 = vadd.xlane.f32.xlu0 %v913
    %v915 = vpop.xlane.xlu0 %914
    %v916 = vrcp.pop %v915
    %v917 = vmul.f32 %v912, %v916
    %919 = vrot.lane.b32.xlu0 %v904, 24
    %v920 = vpop.permute.xlu0 %919
    %vm922 = vcmask 261312
    %923 = vst.msk [vmem:[%s10] sm:$0xff] %vm922, %v920
    %925 = vrot.lane.b32.xlu0 %v917, 56
    %v926 = vpop.permute.xlu0 %925
    %vm928 = vcmask 523712
    %929 = vst.msk [vmem:[%s10] sm:$0xff] %vm928, %v926
    %930 = vrot.lane.b32.xlu0 %v265, 72
    %v931 = vpop.permute.xlu0 %930
    %v933 = vsel %vm289, %v917, 0
    %935 = vmatprep.subr.mxu0 0.0
    %936 = vmatpush1.msra.mxu0 %v931
    %937 = vmatprep.subr.mxu0 0.0
    %938 = vmatpush1.msra.mxu0 0.0
    %939 = vmatprep.subr.mxu0 0.0
    %940 = vmatpush1.msra.mxu0 0.0
    %941 = vmatprep.subr.mxu0 0.0
    %942 = vmatpush1.msra.mxu0 0.0
    %943 = vmatprep.subr.mxu0 0.0
    %944 = vmatpush1.msra.mxu0 0.0
    %945 = vmatprep.subr.mxu0 0.0
    %946 = vmatpush1.msra.mxu0 0.0
    %947 = vmatprep.subr.mxu0 0.0
    %948 = vmatpush1.msra.mxu0 0.0
    %949 = vmatprep.subr.mxu0 0.0
    %950 = vmatpush1.msra.mxu0 0.0
    %951 = vmatprep.subr.mxu0 0.0
    %952 = vmatpush1.msra.mxu0 0.0
    %953 = vmatprep.subr.mxu0 0.0
    %954 = vmatpush1.msra.mxu0 0.0
    %955 = vmatprep.subr.mxu0 0.0
    %956 = vmatpush1.msra.mxu0 0.0
    %957 = vmatprep.subr.mxu0 0.0
    %958 = vmatpush1.msra.mxu0 0.0
    %959 = vmatprep.subr.mxu0 0.0
    %960 = vmatpush1.msra.mxu0 0.0
    %961 = vmatprep.subr.mxu0 0.0
    %962 = vmatpush1.msra.mxu0 0.0
    %963 = vmatprep.subr.mxu0 0.0
    %964 = vmatpush1.msra.mxu0 0.0
    %965 = vmatprep.subr.mxu0 0.0
    %966 = vmatpush1.msra.mxu0 0.0
    %967 = vmatprep.subr.mxu0 0.0
    %968 = vmatpush1.msra.mxu0 0.0
    %969 = vmatprep.subr.mxu0 0.0
    %970 = vmatpush1.msra.mxu0 0.0
    %971 = vmatprep.subr.mxu0 0.0
    %972 = vmatpush1.msra.mxu0 0.0
    %973 = vmatprep.subr.mxu0 0.0
    %974 = vmatpush1.msra.mxu0 0.0
    %975 = vmatprep.subr.mxu0 0.0
    %976 = vmatpush1.msra.mxu0 0.0
    %977 = vmatprep.subr.mxu0 0.0
    %978 = vmatpush1.msra.mxu0 0.0
    %979 = vmatprep.subr.mxu0 0.0
    %980 = vmatpush1.msra.mxu0 0.0
    %981 = vmatprep.subr.mxu0 0.0
    %982 = vmatpush1.msra.mxu0 0.0
    %983 = vmatprep.subr.mxu0 0.0
    %984 = vmatpush1.msra.mxu0 0.0
    %985 = vmatprep.subr.mxu0 0.0
    %986 = vmatpush1.msra.mxu0 0.0
    %987 = vmatprep.subr.mxu0 0.0
    %988 = vmatpush1.msra.mxu0 0.0
    %989 = vmatprep.subr.mxu0 0.0
    %990 = vmatpush1.msra.mxu0 0.0
    %991 = vmatprep.subr.mxu0 0.0
    %992 = vmatpush1.msra.mxu0 0.0
    %993 = vmatprep.subr.mxu0 0.0
    %994 = vmatpush1.msra.mxu0 0.0
    %995 = vmatprep.subr.mxu0 0.0
    %996 = vmatpush1.msra.mxu0 0.0
    %997 = vmatprep.subr.mxu0 0.0
    %998 = vmatpush1.msra.mxu0 0.0
    %999 = vmatprep.mubr.f32.mxu0 0.0
    %1000 = vmatmul.mubr.f32.gmra.mrb[0].mxu0 %v933
    %v1001 = vpop.f32.mrb[0].mxu0
    %v1002 = vadd.f32 0.0, %v1001
    %v1003 = vpop.f32.mrb[0].mxu0
    %1004 = vdwg.mxu0
    %1006 = vrot.lane.b32.xlu0 %v1002, 88
    %v1007 = vpop.permute.xlu0 %1006
    %vm1009 = vcmask 786112
    %1010 = vst.msk [vmem:[%s8] sm:$0xff] %vm1009, %v1007
    %v1012 = vsel %vm289, %v288, 0
    %v1015 = vsel %vm289, %v270, 0
    %1017 = vmatprep.subr.mxu0 0.0
    %1018 = vmatpush1.xpose.msra.mxu0 %v1015
    %1019 = vmatprep.subr.mxu0 0.0
    %1020 = vmatpush1.xpose.msra.mxu0 0.0
    %1021 = vmatprep.subr.mxu0 0.0
    %1022 = vmatpush1.xpose.msra.mxu0 0.0
    %1023 = vmatprep.subr.mxu0 0.0
    %1024 = vmatpush1.xpose.msra.mxu0 0.0
    %1025 = vmatprep.subr.mxu0 0.0
    %1026 = vmatpush1.xpose.msra.mxu0 0.0
    %1027 = vmatprep.subr.mxu0 0.0
    %1028 = vmatpush1.xpose.msra.mxu0 0.0
    %1029 = vmatprep.subr.mxu0 0.0
    %1030 = vmatpush1.xpose.msra.mxu0 0.0
    %1031 = vmatprep.subr.mxu0 0.0
    %1032 = vmatpush1.xpose.msra.mxu0 0.0
    %1033 = vmatprep.subr.mxu0 0.0
    %1034 = vmatpush1.xpose.msra.mxu0 0.0
    %1035 = vmatprep.subr.mxu0 0.0
    %1036 = vmatpush1.xpose.msra.mxu0 0.0
    %1037 = vmatprep.subr.mxu0 0.0
    %1038 = vmatpush1.xpose.msra.mxu0 0.0
    %1039 = vmatprep.subr.mxu0 0.0
    %1040 = vmatpush1.xpose.msra.mxu0 0.0
    %1041 = vmatprep.subr.mxu0 0.0
    %1042 = vmatpush1.xpose.msra.mxu0 0.0
    %1043 = vmatprep.subr.mxu0 0.0
    %1044 = vmatpush1.xpose.msra.mxu0 0.0
    %1045 = vmatprep.subr.mxu0 0.0
    %1046 = vmatpush1.xpose.msra.mxu0 0.0
    %1047 = vmatprep.subr.mxu0 0.0
    %1048 = vmatpush1.xpose.msra.mxu0 0.0
    %1049 = vmatprep.subr.mxu0 0.0
    %1050 = vmatpush1.xpose.msra.mxu0 0.0
    %1051 = vmatprep.subr.mxu0 0.0
    %1052 = vmatpush1.xpose.msra.mxu0 0.0
    %1053 = vmatprep.subr.mxu0 0.0
    %1054 = vmatpush1.xpose.msra.mxu0 0.0
    %1055 = vmatprep.subr.mxu0 0.0
    %1056 = vmatpush1.xpose.msra.mxu0 0.0
    %1057 = vmatprep.subr.mxu0 0.0
    %1058 = vmatpush1.xpose.msra.mxu0 0.0
    %1059 = vmatprep.subr.mxu0 0.0
    %1060 = vmatpush1.xpose.msra.mxu0 0.0
    %1061 = vmatprep.subr.mxu0 0.0
    %1062 = vmatpush1.xpose.msra.mxu0 0.0
    %1063 = vmatprep.subr.mxu0 0.0
    %1064 = vmatpush1.xpose.msra.mxu0 0.0
    %1065 = vmatprep.subr.mxu0 0.0
    %1066 = vmatpush1.xpose.msra.mxu0 0.0
    %1067 = vmatprep.subr.mxu0 0.0
    %1068 = vmatpush1.xpose.msra.mxu0 0.0
    %1069 = vmatprep.subr.mxu0 0.0
    %1070 = vmatpush1.xpose.msra.mxu0 0.0
    %1071 = vmatprep.subr.mxu0 0.0
    %1072 = vmatpush1.xpose.msra.mxu0 0.0
    %1073 = vmatprep.subr.mxu0 0.0
    %1074 = vmatpush1.xpose.msra.mxu0 0.0
    %1075 = vmatprep.subr.mxu0 0.0
    %1076 = vmatpush1.xpose.msra.mxu0 0.0
    %1077 = vmatprep.subr.mxu0 0.0
    %1078 = vmatpush1.xpose.msra.mxu0 0.0
    %1079 = vmatprep.subr.mxu0 0.0
    %1080 = vmatpush1.xpose.msra.mxu0 0.0
    %1081 = vmatprep.mubr.f32.mxu0 0.0
    %1082 = vmatmul.mubr.f32.gmra.mrb[0].mxu0 %v1012
    %v1083 = vpop.f32.mrb[0].mxu0
    %v1084 = vadd.f32 0.0, %v1083
    %v1085 = vpop.f32.mrb[0].mxu0
    %1086 = vdwg.mxu0
    %v1087 = vsel %vm289, %v1084, -inf
    %1088 = vmax.xlane.f32.xlu0 %v1087
    %v1089 = vpop.xlane.xlu0 %1088
    %v1090 = vsub.f32 %v1084, %v1089
    %v1091 = vmul.f32 %v1090, 1.442695
    %v1092 = vpow.pop %v1091
    %v1093 = vsel %vm289, %v1092, 0.0
    %1094 = vadd.xlane.f32.xlu0 %v1093
    %v1095 = vpop.xlane.xlu0 %1094
    %v1096 = vrcp.pop %v1095
    %v1097 = vmul.f32 %v1092, %v1096
    %1098 = vst.msk [vmem:[%s10 + $0x8] sm:$0xff] %vm289, %v1084
    %1100 = vrot.lane.b32.xlu0 %v1097, 32
    %v1101 = vpop.permute.xlu0 %1100
    %1103 = vst.msk [vmem:[%s10 + $0x8] sm:$0xff] %vm382, %v1101
    %1104 = vrot.lane.b32.xlu0 %v270, 96
    %v1105 = vpop.permute.xlu0 %1104
    %v1107 = vsel %vm289, %v1097, 0
    %1109 = vmatprep.subr.mxu0 0.0
    %1110 = vmatpush1.msra.mxu0 %v1105
    %1111 = vmatprep.subr.mxu0 0.0
    %1112 = vmatpush1.msra.mxu0 0.0
    %1113 = vmatprep.subr.mxu0 0.0
    %1114 = vmatpush1.msra.mxu0 0.0
    %1115 = vmatprep.subr.mxu0 0.0
    %1116 = vmatpush1.msra.mxu0 0.0
    %1117 = vmatprep.subr.mxu0 0.0
    %1118 = vmatpush1.msra.mxu0 0.0
    %1119 = vmatprep.subr.mxu0 0.0
    %1120 = vmatpush1.msra.mxu0 0.0
    %1121 = vmatprep.subr.mxu0 0.0
    %1122 = vmatpush1.msra.mxu0 0.0
    %1123 = vmatprep.subr.mxu0 0.0
    %1124 = vmatpush1.msra.mxu0 0.0
    %1125 = vmatprep.subr.mxu0 0.0
    %1126 = vmatpush1.msra.mxu0 0.0
    %1127 = vmatprep.subr.mxu0 0.0
    %1128 = vmatpush1.msra.mxu0 0.0
    %1129 = vmatprep.subr.mxu0 0.0
    %1130 = vmatpush1.msra.mxu0 0.0
    %1131 = vmatprep.subr.mxu0 0.0
    %1132 = vmatpush1.msra.mxu0 0.0
    %1133 = vmatprep.subr.mxu0 0.0
    %1134 = vmatpush1.msra.mxu0 0.0
    %1135 = vmatprep.subr.mxu0 0.0
    %1136 = vmatpush1.msra.mxu0 0.0
    %1137 = vmatprep.subr.mxu0 0.0
    %1138 = vmatpush1.msra.mxu0 0.0
    %1139 = vmatprep.subr.mxu0 0.0
    %1140 = vmatpush1.msra.mxu0 0.0
    %1141 = vmatprep.subr.mxu0 0.0
    %1142 = vmatpush1.msra.mxu0 0.0
    %1143 = vmatprep.subr.mxu0 0.0
    %1144 = vmatpush1.msra.mxu0 0.0
    %1145 = vmatprep.subr.mxu0 0.0
    %1146 = vmatpush1.msra.mxu0 0.0
    %1147 = vmatprep.subr.mxu0 0.0
    %1148 = vmatpush1.msra.mxu0 0.0
    %1149 = vmatprep.subr.mxu0 0.0
    %1150 = vmatpush1.msra.mxu0 0.0
    %1151 = vmatprep.subr.mxu0 0.0
    %1152 = vmatpush1.msra.mxu0 0.0
    %1153 = vmatprep.subr.mxu0 0.0
    %1154 = vmatpush1.msra.mxu0 0.0
    %1155 = vmatprep.subr.mxu0 0.0
    %1156 = vmatpush1.msra.mxu0 0.0
    %1157 = vmatprep.subr.mxu0 0.0
    %1158 = vmatpush1.msra.mxu0 0.0
    %1159 = vmatprep.subr.mxu0 0.0
    %1160 = vmatpush1.msra.mxu0 0.0
    %1161 = vmatprep.subr.mxu0 0.0
    %1162 = vmatpush1.msra.mxu0 0.0
    %1163 = vmatprep.subr.mxu0 0.0
    %1164 = vmatpush1.msra.mxu0 0.0
    %1165 = vmatprep.subr.mxu0 0.0
    %1166 = vmatpush1.msra.mxu0 0.0
    %1167 = vmatprep.subr.mxu0 0.0
    %1168 = vmatpush1.msra.mxu0 0.0
    %1169 = vmatprep.subr.mxu0 0.0
    %1170 = vmatpush1.msra.mxu0 0.0
    %1171 = vmatprep.subr.mxu0 0.0
    %1172 = vmatpush1.msra.mxu0 0.0
    %1173 = vmatprep.mubr.f32.mxu0 0.0
    %1174 = vmatmul.mubr.f32.gmra.mrb[0].mxu0 %v1107
    %v1175 = vpop.f32.mrb[0].mxu0
    %v1176 = vadd.f32 0.0, %v1175
    %v1177 = vpop.f32.mrb[0].mxu0
    %1178 = vdwg.mxu0
    %1180 = vrot.lane.b32.xlu0 %v1176, 64
    %v1181 = vpop.permute.xlu0 %1180
    %1183 = vst.msk [vmem:[%s8 + $0x8] sm:$0xff] %vm463, %v1181
    %1184 = vrot.lane.b32.xlu0 %v288, 120
    %v1185 = vpop.permute.xlu0 %1184
    %1186 = vrot.lane.b32.xlu0 %v270, 120
    %v1187 = vpop.permute.xlu0 %1186
    %v1188 = vsel %vm289, %v1185, 0
    %v1190 = vsel %vm289, %v1187, 0
    %1192 = vmatprep.subr.mxu0 0.0
    %1193 = vmatpush1.xpose.msra.mxu0 %v1190
    %1194 = vmatprep.subr.mxu0 0.0
    %1195 = vmatpush1.xpose.msra.mxu0 0.0
    %1196 = vmatprep.subr.mxu0 0.0
    %1197 = vmatpush1.xpose.msra.mxu0 0.0
    %1198 = vmatprep.subr.mxu0 0.0
    %1199 = vmatpush1.xpose.msra.mxu0 0.0
    %1200 = vmatprep.subr.mxu0 0.0
    %1201 = vmatpush1.xpose.msra.mxu0 0.0
    %1202 = vmatprep.subr.mxu0 0.0
    %1203 = vmatpush1.xpose.msra.mxu0 0.0
    %1204 = vmatprep.subr.mxu0 0.0
    %1205 = vmatpush1.xpose.msra.mxu0 0.0
    %1206 = vmatprep.subr.mxu0 0.0
    %1207 = vmatpush1.xpose.msra.mxu0 0.0
    %1208 = vmatprep.subr.mxu0 0.0
    %1209 = vmatpush1.xpose.msra.mxu0 0.0
    %1210 = vmatprep.subr.mxu0 0.0
    %1211 = vmatpush1.xpose.msra.mxu0 0.0
    %1212 = vmatprep.subr.mxu0 0.0
    %1213 = vmatpush1.xpose.msra.mxu0 0.0
    %1214 = vmatprep.subr.mxu0 0.0
    %1215 = vmatpush1.xpose.msra.mxu0 0.0
    %1216 = vmatprep.subr.mxu0 0.0
    %1217 = vmatpush1.xpose.msra.mxu0 0.0
    %1218 = vmatprep.subr.mxu0 0.0
    %1219 = vmatpush1.xpose.msra.mxu0 0.0
    %1220 = vmatprep.subr.mxu0 0.0
    %1221 = vmatpush1.xpose.msra.mxu0 0.0
    %1222 = vmatprep.subr.mxu0 0.0
    %1223 = vmatpush1.xpose.msra.mxu0 0.0
    %1224 = vmatprep.subr.mxu0 0.0
    %1225 = vmatpush1.xpose.msra.mxu0 0.0
    %1226 = vmatprep.subr.mxu0 0.0
    %1227 = vmatpush1.xpose.msra.mxu0 0.0
    %1228 = vmatprep.subr.mxu0 0.0
    %1229 = vmatpush1.xpose.msra.mxu0 0.0
    %1230 = vmatprep.subr.mxu0 0.0
    %1231 = vmatpush1.xpose.msra.mxu0 0.0
    %1232 = vmatprep.subr.mxu0 0.0
    %1233 = vmatpush1.xpose.msra.mxu0 0.0
    %1234 = vmatprep.subr.mxu0 0.0
    %1235 = vmatpush1.xpose.msra.mxu0 0.0
    %1236 = vmatprep.subr.mxu0 0.0
    %1237 = vmatpush1.xpose.msra.mxu0 0.0
    %1238 = vmatprep.subr.mxu0 0.0
    %1239 = vmatpush1.xpose.msra.mxu0 0.0
    %1240 = vmatprep.subr.mxu0 0.0
    %1241 = vmatpush1.xpose.msra.mxu0 0.0
    %1242 = vmatprep.subr.mxu0 0.0
    %1243 = vmatpush1.xpose.msra.mxu0 0.0
    %1244 = vmatprep.subr.mxu0 0.0
    %1245 = vmatpush1.xpose.msra.mxu0 0.0
    %1246 = vmatprep.subr.mxu0 0.0
    %1247 = vmatpush1.xpose.msra.mxu0 0.0
    %1248 = vmatprep.subr.mxu0 0.0
    %1249 = vmatpush1.xpose.msra.mxu0 0.0
    %1250 = vmatprep.subr.mxu0 0.0
    %1251 = vmatpush1.xpose.msra.mxu0 0.0
    %1252 = vmatprep.subr.mxu0 0.0
    %1253 = vmatpush1.xpose.msra.mxu0 0.0
    %1254 = vmatprep.subr.mxu0 0.0
    %1255 = vmatpush1.xpose.msra.mxu0 0.0
    %1256 = vmatprep.mubr.f32.mxu0 0.0
    %1257 = vmatmul.mubr.f32.gmra.mrb[0].mxu0 %v1188
    %v1258 = vpop.f32.mrb[0].mxu0
    %v1259 = vadd.f32 0.0, %v1258
    %v1260 = vpop.f32.mrb[0].mxu0
    %1261 = vdwg.mxu0
    %v1262 = vsel %vm289, %v1259, -inf
    %1263 = vmax.xlane.f32.xlu0 %v1262
    %v1264 = vpop.xlane.xlu0 %1263
    %v1265 = vsub.f32 %v1259, %v1264
    %v1266 = vmul.f32 %v1265, 1.442695
    %v1267 = vpow.pop %v1266
    %v1268 = vsel %vm289, %v1267, 0.0
    %1269 = vadd.xlane.f32.xlu0 %v1268
    %v1270 = vpop.xlane.xlu0 %1269
    %v1271 = vrcp.pop %v1270
    %v1272 = vmul.f32 %v1267, %v1271
    %1274 = vrot.lane.b32.xlu0 %v1259, 8
    %v1275 = vpop.permute.xlu0 %1274
    %1277 = vst.msk [vmem:[%s10 + $0x8] sm:$0xff] %vm558, %v1275
    %1279 = vrot.lane.b32.xlu0 %v1272, 40
    %v1280 = vpop.permute.xlu0 %1279
    %1282 = vst.msk [vmem:[%s10 + $0x8] sm:$0xff] %vm564, %v1280
    %1283 = vrot.lane.b32.xlu0 %v270, 88
    %v1284 = vpop.permute.xlu0 %1283
    %v1286 = vsel %vm289, %v1272, 0
    %1288 = vmatprep.subr.mxu0 0.0
    %1289 = vmatpush1.msra.mxu0 %v1284
    %1290 = vmatprep.subr.mxu0 0.0
    %1291 = vmatpush1.msra.mxu0 0.0
    %1292 = vmatprep.subr.mxu0 0.0
    %1293 = vmatpush1.msra.mxu0 0.0
    %1294 = vmatprep.subr.mxu0 0.0
    %1295 = vmatpush1.msra.mxu0 0.0
    %1296 = vmatprep.subr.mxu0 0.0
    %1297 = vmatpush1.msra.mxu0 0.0
    %1298 = vmatprep.subr.mxu0 0.0
    %1299 = vmatpush1.msra.mxu0 0.0
    %1300 = vmatprep.subr.mxu0 0.0
    %1301 = vmatpush1.msra.mxu0 0.0
    %1302 = vmatprep.subr.mxu0 0.0
    %1303 = vmatpush1.msra.mxu0 0.0
    %1304 = vmatprep.subr.mxu0 0.0
    %1305 = vmatpush1.msra.mxu0 0.0
    %1306 = vmatprep.subr.mxu0 0.0
    %1307 = vmatpush1.msra.mxu0 0.0
    %1308 = vmatprep.subr.mxu0 0.0
    %1309 = vmatpush1.msra.mxu0 0.0
    %1310 = vmatprep.subr.mxu0 0.0
    %1311 = vmatpush1.msra.mxu0 0.0
    %1312 = vmatprep.subr.mxu0 0.0
    %1313 = vmatpush1.msra.mxu0 0.0
    %1314 = vmatprep.subr.mxu0 0.0
    %1315 = vmatpush1.msra.mxu0 0.0
    %1316 = vmatprep.subr.mxu0 0.0
    %1317 = vmatpush1.msra.mxu0 0.0
    %1318 = vmatprep.subr.mxu0 0.0
    %1319 = vmatpush1.msra.mxu0 0.0
    %1320 = vmatprep.subr.mxu0 0.0
    %1321 = vmatpush1.msra.mxu0 0.0
    %1322 = vmatprep.subr.mxu0 0.0
    %1323 = vmatpush1.msra.mxu0 0.0
    %1324 = vmatprep.subr.mxu0 0.0
    %1325 = vmatpush1.msra.mxu0 0.0
    %1326 = vmatprep.subr.mxu0 0.0
    %1327 = vmatpush1.msra.mxu0 0.0
    %1328 = vmatprep.subr.mxu0 0.0
    %1329 = vmatpush1.msra.mxu0 0.0
    %1330 = vmatprep.subr.mxu0 0.0
    %1331 = vmatpush1.msra.mxu0 0.0
    %1332 = vmatprep.subr.mxu0 0.0
    %1333 = vmatpush1.msra.mxu0 0.0
    %1334 = vmatprep.subr.mxu0 0.0
    %1335 = vmatpush1.msra.mxu0 0.0
    %1336 = vmatprep.subr.mxu0 0.0
    %1337 = vmatpush1.msra.mxu0 0.0
    %1338 = vmatprep.subr.mxu0 0.0
    %1339 = vmatpush1.msra.mxu0 0.0
    %1340 = vmatprep.subr.mxu0 0.0
    %1341 = vmatpush1.msra.mxu0 0.0
    %1342 = vmatprep.subr.mxu0 0.0
    %1343 = vmatpush1.msra.mxu0 0.0
    %1344 = vmatprep.subr.mxu0 0.0
    %1345 = vmatpush1.msra.mxu0 0.0
    %1346 = vmatprep.subr.mxu0 0.0
    %1347 = vmatpush1.msra.mxu0 0.0
    %1348 = vmatprep.subr.mxu0 0.0
    %1349 = vmatpush1.msra.mxu0 0.0
    %1350 = vmatprep.subr.mxu0 0.0
    %1351 = vmatpush1.msra.mxu0 0.0
    %1352 = vmatprep.mubr.f32.mxu0 0.0
    %1353 = vmatmul.mubr.f32.gmra.mrb[0].mxu0 %v1286
    %v1354 = vpop.f32.mrb[0].mxu0
    %v1355 = vadd.f32 0.0, %v1354
    %v1356 = vpop.f32.mrb[0].mxu0
    %1357 = vdwg.mxu0
    %1359 = vrot.lane.b32.xlu0 %v1355, 72
    %v1360 = vpop.permute.xlu0 %1359
    %1362 = vst.msk [vmem:[%s8 + $0x8] sm:$0xff] %vm645, %v1360
    %1363 = vrot.lane.b32.xlu0 %v288, 112
    %v1364 = vpop.permute.xlu0 %1363
    %1365 = vrot.lane.b32.xlu0 %v270, 112
    %v1366 = vpop.permute.xlu0 %1365
    %v1367 = vsel %vm289, %v1364, 0
    %v1369 = vsel %vm289, %v1366, 0
    %1371 = vmatprep.subr.mxu0 0.0
    %1372 = vmatpush1.xpose.msra.mxu0 %v1369
    %1373 = vmatprep.subr.mxu0 0.0
    %1374 = vmatpush1.xpose.msra.mxu0 0.0
    %1375 = vmatprep.subr.mxu0 0.0
    %1376 = vmatpush1.xpose.msra.mxu0 0.0
    %1377 = vmatprep.subr.mxu0 0.0
    %1378 = vmatpush1.xpose.msra.mxu0 0.0
    %1379 = vmatprep.subr.mxu0 0.0
    %1380 = vmatpush1.xpose.msra.mxu0 0.0
    %1381 = vmatprep.subr.mxu0 0.0
    %1382 = vmatpush1.xpose.msra.mxu0 0.0
    %1383 = vmatprep.subr.mxu0 0.0
    %1384 = vmatpush1.xpose.msra.mxu0 0.0
    %1385 = vmatprep.subr.mxu0 0.0
    %1386 = vmatpush1.xpose.msra.mxu0 0.0
    %1387 = vmatprep.subr.mxu0 0.0
    %1388 = vmatpush1.xpose.msra.mxu0 0.0
    %1389 = vmatprep.subr.mxu0 0.0
    %1390 = vmatpush1.xpose.msra.mxu0 0.0
    %1391 = vmatprep.subr.mxu0 0.0
    %1392 = vmatpush1.xpose.msra.mxu0 0.0
    %1393 = vmatprep.subr.mxu0 0.0
    %1394 = vmatpush1.xpose.msra.mxu0 0.0
    %1395 = vmatprep.subr.mxu0 0.0
    %1396 = vmatpush1.xpose.msra.mxu0 0.0
    %1397 = vmatprep.subr.mxu0 0.0
    %1398 = vmatpush1.xpose.msra.mxu0 0.0
    %1399 = vmatprep.subr.mxu0 0.0
    %1400 = vmatpush1.xpose.msra.mxu0 0.0
    %1401 = vmatprep.subr.mxu0 0.0
    %1402 = vmatpush1.xpose.msra.mxu0 0.0
    %1403 = vmatprep.subr.mxu0 0.0
    %1404 = vmatpush1.xpose.msra.mxu0 0.0
    %1405 = vmatprep.subr.mxu0 0.0
    %1406 = vmatpush1.xpose.msra.mxu0 0.0
    %1407 = vmatprep.subr.mxu0 0.0
    %1408 = vmatpush1.xpose.msra.mxu0 0.0
    %1409 = vmatprep.subr.mxu0 0.0
    %1410 = vmatpush1.xpose.msra.mxu0 0.0
    %1411 = vmatprep.subr.mxu0 0.0
    %1412 = vmatpush1.xpose.msra.mxu0 0.0
    %1413 = vmatprep.subr.mxu0 0.0
    %1414 = vmatpush1.xpose.msra.mxu0 0.0
    %1415 = vmatprep.subr.mxu0 0.0
    %1416 = vmatpush1.xpose.msra.mxu0 0.0
    %1417 = vmatprep.subr.mxu0 0.0
    %1418 = vmatpush1.xpose.msra.mxu0 0.0
    %1419 = vmatprep.subr.mxu0 0.0
    %1420 = vmatpush1.xpose.msra.mxu0 0.0
    %1421 = vmatprep.subr.mxu0 0.0
    %1422 = vmatpush1.xpose.msra.mxu0 0.0
    %1423 = vmatprep.subr.mxu0 0.0
    %1424 = vmatpush1.xpose.msra.mxu0 0.0
    %1425 = vmatprep.subr.mxu0 0.0
    %1426 = vmatpush1.xpose.msra.mxu0 0.0
    %1427 = vmatprep.subr.mxu0 0.0
    %1428 = vmatpush1.xpose.msra.mxu0 0.0
    %1429 = vmatprep.subr.mxu0 0.0
    %1430 = vmatpush1.xpose.msra.mxu0 0.0
    %1431 = vmatprep.subr.mxu0 0.0
    %1432 = vmatpush1.xpose.msra.mxu0 0.0
    %1433 = vmatprep.subr.mxu0 0.0
    %1434 = vmatpush1.xpose.msra.mxu0 0.0
    %1435 = vmatprep.mubr.f32.mxu0 0.0
    %1436 = vmatmul.mubr.f32.gmra.mrb[0].mxu0 %v1367
    %v1437 = vpop.f32.mrb[0].mxu0
    %v1438 = vadd.f32 0.0, %v1437
    %v1439 = vpop.f32.mrb[0].mxu0
    %1440 = vdwg.mxu0
    %v1441 = vsel %vm289, %v1438, -inf
    %1442 = vmax.xlane.f32.xlu0 %v1441
    %v1443 = vpop.xlane.xlu0 %1442
    %v1444 = vsub.f32 %v1438, %v1443
    %v1445 = vmul.f32 %v1444, 1.442695
    %v1446 = vpow.pop %v1445
    %v1447 = vsel %vm289, %v1446, 0.0
    %1448 = vadd.xlane.f32.xlu0 %v1447
    %v1449 = vpop.xlane.xlu0 %1448
    %v1450 = vrcp.pop %v1449
    %v1451 = vmul.f32 %v1446, %v1450
    %1453 = vrot.lane.b32.xlu0 %v1438, 16
    %v1454 = vpop.permute.xlu0 %1453
    %1456 = vst.msk [vmem:[%s10 + $0x8] sm:$0xff] %vm740, %v1454
    %1458 = vrot.lane.b32.xlu0 %v1451, 48
    %v1459 = vpop.permute.xlu0 %1458
    %1461 = vst.msk [vmem:[%s10 + $0x8] sm:$0xff] %vm746, %v1459
    %1462 = vrot.lane.b32.xlu0 %v270, 80
    %v1463 = vpop.permute.xlu0 %1462
    %v1465 = vsel %vm289, %v1451, 0
    %1467 = vmatprep.subr.mxu0 0.0
    %1468 = vmatpush1.msra.mxu0 %v1463
    %1469 = vmatprep.subr.mxu0 0.0
    %1470 = vmatpush1.msra.mxu0 0.0
    %1471 = vmatprep.subr.mxu0 0.0
    %1472 = vmatpush1.msra.mxu0 0.0
    %1473 = vmatprep.subr.mxu0 0.0
    %1474 = vmatpush1.msra.mxu0 0.0
    %1475 = vmatprep.subr.mxu0 0.0
    %1476 = vmatpush1.msra.mxu0 0.0
    %1477 = vmatprep.subr.mxu0 0.0
    %1478 = vmatpush1.msra.mxu0 0.0
    %1479 = vmatprep.subr.mxu0 0.0
    %1480 = vmatpush1.msra.mxu0 0.0
    %1481 = vmatprep.subr.mxu0 0.0
    %1482 = vmatpush1.msra.mxu0 0.0
    %1483 = vmatprep.subr.mxu0 0.0
    %1484 = vmatpush1.msra.mxu0 0.0
    %1485 = vmatprep.subr.mxu0 0.0
    %1486 = vmatpush1.msra.mxu0 0.0
    %1487 = vmatprep.subr.mxu0 0.0
    %1488 = vmatpush1.msra.mxu0 0.0
    %1489 = vmatprep.subr.mxu0 0.0
    %1490 = vmatpush1.msra.mxu0 0.0
    %1491 = vmatprep.subr.mxu0 0.0
    %1492 = vmatpush1.msra.mxu0 0.0
    %1493 = vmatprep.subr.mxu0 0.0
    %1494 = vmatpush1.msra.mxu0 0.0
    %1495 = vmatprep.subr.mxu0 0.0
    %1496 = vmatpush1.msra.mxu0 0.0
    %1497 = vmatprep.subr.mxu0 0.0
    %1498 = vmatpush1.msra.mxu0 0.0
    %1499 = vmatprep.subr.mxu0 0.0
    %1500 = vmatpush1.msra.mxu0 0.0
    %1501 = vmatprep.subr.mxu0 0.0
    %1502 = vmatpush1.msra.mxu0 0.0
    %1503 = vmatprep.subr.mxu0 0.0
    %1504 = vmatpush1.msra.mxu0 0.0
    %1505 = vmatprep.subr.mxu0 0.0
    %1506 = vmatpush1.msra.mxu0 0.0
    %1507 = vmatprep.subr.mxu0 0.0
    %1508 = vmatpush1.msra.mxu0 0.0
    %1509 = vmatprep.subr.mxu0 0.0
    %1510 = vmatpush1.msra.mxu0 0.0
    %1511 = vmatprep.subr.mxu0 0.0
    %1512 = vmatpush1.msra.mxu0 0.0
    %1513 = vmatprep.subr.mxu0 0.0
    %1514 = vmatpush1.msra.mxu0 0.0
    %1515 = vmatprep.subr.mxu0 0.0
    %1516 = vmatpush1.msra.mxu0 0.0
    %1517 = vmatprep.subr.mxu0 0.0
    %1518 = vmatpush1.msra.mxu0 0.0
    %1519 = vmatprep.subr.mxu0 0.0
    %1520 = vmatpush1.msra.mxu0 0.0
    %1521 = vmatprep.subr.mxu0 0.0
    %1522 = vmatpush1.msra.mxu0 0.0
    %1523 = vmatprep.subr.mxu0 0.0
    %1524 = vmatpush1.msra.mxu0 0.0
    %1525 = vmatprep.subr.mxu0 0.0
    %1526 = vmatpush1.msra.mxu0 0.0
    %1527 = vmatprep.subr.mxu0 0.0
    %1528 = vmatpush1.msra.mxu0 0.0
    %1529 = vmatprep.subr.mxu0 0.0
    %1530 = vmatpush1.msra.mxu0 0.0
    %1531 = vmatprep.mubr.f32.mxu0 0.0
    %1532 = vmatmul.mubr.f32.gmra.mrb[0].mxu0 %v1465
    %v1533 = vpop.f32.mrb[0].mxu0
    %v1534 = vadd.f32 0.0, %v1533
    %v1535 = vpop.f32.mrb[0].mxu0
    %1536 = vdwg.mxu0
    %1538 = vrot.lane.b32.xlu0 %v1534, 80
    %v1539 = vpop.permute.xlu0 %1538
    %1541 = vst.msk [vmem:[%s8 + $0x8] sm:$0xff] %vm827, %v1539
    %1542 = vrot.lane.b32.xlu0 %v288, 104
    %v1543 = vpop.permute.xlu0 %1542
    %1544 = vrot.lane.b32.xlu0 %v270, 104
    %v1545 = vpop.permute.xlu0 %1544
    %v1546 = vsel %vm289, %v1543, 0
    %v1548 = vsel %vm289, %v1545, 0
    %1550 = vmatprep.subr.mxu0 0.0
    %1551 = vmatpush1.xpose.msra.mxu0 %v1548
    %1552 = vmatprep.subr.mxu0 0.0
    %1553 = vmatpush1.xpose.msra.mxu0 0.0
    %1554 = vmatprep.subr.mxu0 0.0
    %1555 = vmatpush1.xpose.msra.mxu0 0.0
    %1556 = vmatprep.subr.mxu0 0.0
    %1557 = vmatpush1.xpose.msra.mxu0 0.0
    %1558 = vmatprep.subr.mxu0 0.0
    %1559 = vmatpush1.xpose.msra.mxu0 0.0
    %1560 = vmatprep.subr.mxu0 0.0
    %1561 = vmatpush1.xpose.msra.mxu0 0.0
    %1562 = vmatprep.subr.mxu0 0.0
    %1563 = vmatpush1.xpose.msra.mxu0 0.0
    %1564 = vmatprep.subr.mxu0 0.0
    %1565 = vmatpush1.xpose.msra.mxu0 0.0
    %1566 = vmatprep.subr.mxu0 0.0
    %1567 = vmatpush1.xpose.msra.mxu0 0.0
    %1568 = vmatprep.subr.mxu0 0.0
    %1569 = vmatpush1.xpose.msra.mxu0 0.0
    %1570 = vmatprep.subr.mxu0 0.0
    %1571 = vmatpush1.xpose.msra.mxu0 0.0
    %1572 = vmatprep.subr.mxu0 0.0
    %1573 = vmatpush1.xpose.msra.mxu0 0.0
    %1574 = vmatprep.subr.mxu0 0.0
    %1575 = vmatpush1.xpose.msra.mxu0 0.0
    %1576 = vmatprep.subr.mxu0 0.0
    %1577 = vmatpush1.xpose.msra.mxu0 0.0
    %1578 = vmatprep.subr.mxu0 0.0
    %1579 = vmatpush1.xpose.msra.mxu0 0.0
    %1580 = vmatprep.subr.mxu0 0.0
    %1581 = vmatpush1.xpose.msra.mxu0 0.0
    %1582 = vmatprep.subr.mxu0 0.0
    %1583 = vmatpush1.xpose.msra.mxu0 0.0
    %1584 = vmatprep.subr.mxu0 0.0
    %1585 = vmatpush1.xpose.msra.mxu0 0.0
    %1586 = vmatprep.subr.mxu0 0.0
    %1587 = vmatpush1.xpose.msra.mxu0 0.0
    %1588 = vmatprep.subr.mxu0 0.0
    %1589 = vmatpush1.xpose.msra.mxu0 0.0
    %1590 = vmatprep.subr.mxu0 0.0
    %1591 = vmatpush1.xpose.msra.mxu0 0.0
    %1592 = vmatprep.subr.mxu0 0.0
    %1593 = vmatpush1.xpose.msra.mxu0 0.0
    %1594 = vmatprep.subr.mxu0 0.0
    %1595 = vmatpush1.xpose.msra.mxu0 0.0
    %1596 = vmatprep.subr.mxu0 0.0
    %1597 = vmatpush1.xpose.msra.mxu0 0.0
    %1598 = vmatprep.subr.mxu0 0.0
    %1599 = vmatpush1.xpose.msra.mxu0 0.0
    %1600 = vmatprep.subr.mxu0 0.0
    %1601 = vmatpush1.xpose.msra.mxu0 0.0
    %1602 = vmatprep.subr.mxu0 0.0
    %1603 = vmatpush1.xpose.msra.mxu0 0.0
    %1604 = vmatprep.subr.mxu0 0.0
    %1605 = vmatpush1.xpose.msra.mxu0 0.0
    %1606 = vmatprep.subr.mxu0 0.0
    %1607 = vmatpush1.xpose.msra.mxu0 0.0
    %1608 = vmatprep.subr.mxu0 0.0
    %1609 = vmatpush1.xpose.msra.mxu0 0.0
    %1610 = vmatprep.subr.mxu0 0.0
    %1611 = vmatpush1.xpose.msra.mxu0 0.0
    %1612 = vmatprep.subr.mxu0 0.0
    %1613 = vmatpush1.xpose.msra.mxu0 0.0
    %1614 = vmatprep.mubr.f32.mxu0 0.0
    %1615 = vmatmul.mubr.f32.gmra.mrb[0].mxu0 %v1546
    %v1616 = vpop.f32.mrb[0].mxu0
    %v1617 = vadd.f32 0.0, %v1616
    %v1618 = vpop.f32.mrb[0].mxu0
    %1619 = vdwg.mxu0
    %v1620 = vsel %vm289, %v1617, -inf
    %1621 = vmax.xlane.f32.xlu0 %v1620
    %v1622 = vpop.xlane.xlu0 %1621
    %v1623 = vsub.f32 %v1617, %v1622
    %v1624 = vmul.f32 %v1623, 1.442695
    %v1625 = vpow.pop %v1624
    %v1626 = vsel %vm289, %v1625, 0.0
    %1627 = vadd.xlane.f32.xlu0 %v1626
    %v1628 = vpop.xlane.xlu0 %1627
    %v1629 = vrcp.pop %v1628
    %v1630 = vmul.f32 %v1625, %v1629
    %1632 = vrot.lane.b32.xlu0 %v1617, 24
    %v1633 = vpop.permute.xlu0 %1632
    %1635 = vst.msk [vmem:[%s10 + $0x8] sm:$0xff] %vm922, %v1633
    %1637 = vrot.lane.b32.xlu0 %v1630, 56
    %v1638 = vpop.permute.xlu0 %1637
    %1640 = vst.msk [vmem:[%s10 + $0x8] sm:$0xff] %vm928, %v1638
    %1641 = vrot.lane.b32.xlu0 %v270, 72
    %v1642 = vpop.permute.xlu0 %1641
    %v1644 = vsel %vm289, %v1630, 0
    %1646 = vmatprep.subr.mxu0 0.0
    %1647 = vmatpush1.msra.mxu0 %v1642
    %1648 = vmatprep.subr.mxu0 0.0
    %1649 = vmatpush1.msra.mxu0 0.0
    %1650 = vmatprep.subr.mxu0 0.0
    %1651 = vmatpush1.msra.mxu0 0.0
    %1652 = vmatprep.subr.mxu0 0.0
    %1653 = vmatpush1.msra.mxu0 0.0
    %1654 = vmatprep.subr.mxu0 0.0
    %1655 = vmatpush1.msra.mxu0 0.0
    %1656 = vmatprep.subr.mxu0 0.0
    %1657 = vmatpush1.msra.mxu0 0.0
    %1658 = vmatprep.subr.mxu0 0.0
    %1659 = vmatpush1.msra.mxu0 0.0
    %1660 = vmatprep.subr.mxu0 0.0
    %1661 = vmatpush1.msra.mxu0 0.0
    %1662 = vmatprep.subr.mxu0 0.0
    %1663 = vmatpush1.msra.mxu0 0.0
    %1664 = vmatprep.subr.mxu0 0.0
    %1665 = vmatpush1.msra.mxu0 0.0
    %1666 = vmatprep.subr.mxu0 0.0
    %1667 = vmatpush1.msra.mxu0 0.0
    %1668 = vmatprep.subr.mxu0 0.0
    %1669 = vmatpush1.msra.mxu0 0.0
    %1670 = vmatprep.subr.mxu0 0.0
    %1671 = vmatpush1.msra.mxu0 0.0
    %1672 = vmatprep.subr.mxu0 0.0
    %1673 = vmatpush1.msra.mxu0 0.0
    %1674 = vmatprep.subr.mxu0 0.0
    %1675 = vmatpush1.msra.mxu0 0.0
    %1676 = vmatprep.subr.mxu0 0.0
    %1677 = vmatpush1.msra.mxu0 0.0
    %1678 = vmatprep.subr.mxu0 0.0
    %1679 = vmatpush1.msra.mxu0 0.0
    %1680 = vmatprep.subr.mxu0 0.0
    %1681 = vmatpush1.msra.mxu0 0.0
    %1682 = vmatprep.subr.mxu0 0.0
    %1683 = vmatpush1.msra.mxu0 0.0
    %1684 = vmatprep.subr.mxu0 0.0
    %1685 = vmatpush1.msra.mxu0 0.0
    %1686 = vmatprep.subr.mxu0 0.0
    %1687 = vmatpush1.msra.mxu0 0.0
    %1688 = vmatprep.subr.mxu0 0.0
    %1689 = vmatpush1.msra.mxu0 0.0
    %1690 = vmatprep.subr.mxu0 0.0
    %1691 = vmatpush1.msra.mxu0 0.0
    %1692 = vmatprep.subr.mxu0 0.0
    %1693 = vmatpush1.msra.mxu0 0.0
    %1694 = vmatprep.subr.mxu0 0.0
    %1695 = vmatpush1.msra.mxu0 0.0
    %1696 = vmatprep.subr.mxu0 0.0
    %1697 = vmatpush1.msra.mxu0 0.0
    %1698 = vmatprep.subr.mxu0 0.0
    %1699 = vmatpush1.msra.mxu0 0.0
    %1700 = vmatprep.subr.mxu0 0.0
    %1701 = vmatpush1.msra.mxu0 0.0
    %1702 = vmatprep.subr.mxu0 0.0
    %1703 = vmatpush1.msra.mxu0 0.0
    %1704 = vmatprep.subr.mxu0 0.0
    %1705 = vmatpush1.msra.mxu0 0.0
    %1706 = vmatprep.subr.mxu0 0.0
    %1707 = vmatpush1.msra.mxu0 0.0
    %1708 = vmatprep.subr.mxu0 0.0
    %1709 = vmatpush1.msra.mxu0 0.0
    %1710 = vmatprep.mubr.f32.mxu0 0.0
    %1711 = vmatmul.mubr.f32.gmra.mrb[0].mxu0 %v1644
    %v1712 = vpop.f32.mrb[0].mxu0
    %v1713 = vadd.f32 0.0, %v1712
    %v1714 = vpop.f32.mrb[0].mxu0
    %1715 = vdwg.mxu0
    %1717 = vrot.lane.b32.xlu0 %v1713, 88
    %v1718 = vpop.permute.xlu0 %1717
    %1720 = vst.msk [vmem:[%s8 + $0x8] sm:$0xff] %vm1009, %v1718
    %v1721 = vld [vmem:[%s8] sm:$0xff]
    %v1722 = vld [vmem:[%s8 + $0x8] sm:$0xff]
    %v1723 = vld [vmem:[#allocation6] sm:$0xff]
    %v1724 = vld [vmem:[#allocation6 + $0x8] sm:$0xff]
    %v1725 = vld [vmem:[#allocation6 + $0x10] sm:$0xff]
    %v1726 = vld [vmem:[#allocation6 + $0x18] sm:$0xff]
    %v1727 = vld [vmem:[#allocation7] sm:$0x1]
    %v1729 = vlaneseq
    %v1730 = vshrl.u32 %v1729, 7
    %v1731 = vsub.s32 0, %v1730
    %v1732 = vrot.slane %v1727, %v1731
    %1736 = vrot.lane.b32.xlu0 %v1721, 64
    %v1737 = vpop.permute.xlu0 %1736
    %1738 = vrot.lane.b32.xlu0 %v1722, 64
    %v1739 = vpop.permute.xlu0 %1738
    %v1740 = vsel %vm100, %v1737, 0
    %v1742 = vsel %vm100, %v1739, 0
    %1744 = vmatprep.subr.mxu0 0.0
    %1745 = vmatpush1.msra.mxu0 %v1723
    %1746 = vmatprep.subr.mxu0 0.0
    %1747 = vmatpush1.msra.mxu0 %v1724
    %1748 = vmatprep.subr.mxu0 0.0
    %1749 = vmatpush1.msra.mxu0 %v1725
    %1750 = vmatprep.subr.mxu0 0.0
    %1751 = vmatpush1.msra.mxu0 %v1726
    %1752 = vmatprep.subr.mxu0 0.0
    %1753 = vmatpush1.msra.mxu0 0.0
    %1754 = vmatprep.subr.mxu0 0.0
    %1755 = vmatpush1.msra.mxu0 0.0
    %1756 = vmatprep.subr.mxu0 0.0
    %1757 = vmatpush1.msra.mxu0 0.0
    %1758 = vmatprep.subr.mxu0 0.0
    %1759 = vmatpush1.msra.mxu0 0.0
    %1760 = vmatprep.subr.mxu0 0.0
    %1761 = vmatpush1.msra.mxu0 0.0
    %1762 = vmatprep.subr.mxu0 0.0
    %1763 = vmatpush1.msra.mxu0 0.0
    %1764 = vmatprep.subr.mxu0 0.0
    %1765 = vmatpush1.msra.mxu0 0.0
    %1766 = vmatprep.subr.mxu0 0.0
    %1767 = vmatpush1.msra.mxu0 0.0
    %1768 = vmatprep.subr.mxu0 0.0
    %1769 = vmatpush1.msra.mxu0 0.0
    %1770 = vmatprep.subr.mxu0 0.0
    %1771 = vmatpush1.msra.mxu0 0.0
    %1772 = vmatprep.subr.mxu0 0.0
    %1773 = vmatpush1.msra.mxu0 0.0
    %1774 = vmatprep.subr.mxu0 0.0
    %1775 = vmatpush1.msra.mxu0 0.0
    %1776 = vmatprep.subr.mxu0 0.0
    %1777 = vmatpush1.msra.mxu0 0.0
    %1778 = vmatprep.subr.mxu0 0.0
    %1779 = vmatpush1.msra.mxu0 0.0
    %1780 = vmatprep.subr.mxu0 0.0
    %1781 = vmatpush1.msra.mxu0 0.0
    %1782 = vmatprep.subr.mxu0 0.0
    %1783 = vmatpush1.msra.mxu0 0.0
    %1784 = vmatprep.subr.mxu0 0.0
    %1785 = vmatpush1.msra.mxu0 0.0
    %1786 = vmatprep.subr.mxu0 0.0
    %1787 = vmatpush1.msra.mxu0 0.0
    %1788 = vmatprep.subr.mxu0 0.0
    %1789 = vmatpush1.msra.mxu0 0.0
    %1790 = vmatprep.subr.mxu0 0.0
    %1791 = vmatpush1.msra.mxu0 0.0
    %1792 = vmatprep.subr.mxu0 0.0
    %1793 = vmatpush1.msra.mxu0 0.0
    %1794 = vmatprep.subr.mxu0 0.0
    %1795 = vmatpush1.msra.mxu0 0.0
    %1796 = vmatprep.subr.mxu0 0.0
    %1797 = vmatpush1.msra.mxu0 0.0
    %1798 = vmatprep.subr.mxu0 0.0
    %1799 = vmatpush1.msra.mxu0 0.0
    %1800 = vmatprep.subr.mxu0 0.0
    %1801 = vmatpush1.msra.mxu0 0.0
    %1802 = vmatprep.subr.mxu0 0.0
    %1803 = vmatpush1.msra.mxu0 0.0
    %1804 = vmatprep.subr.mxu0 0.0
    %1805 = vmatpush1.msra.mxu0 0.0
    %1806 = vmatprep.subr.mxu0 0.0
    %1807 = vmatpush1.msra.mxu0 0.0
    %1808 = vmatprep.mubr.f32.mxu0 0.0
    %1809 = vmatmul.mubr.f32.gmra.mrb[0].mxu0 %v1740
    %v1810 = vpop.f32.mrb[0].mxu0
    %v1811 = vadd.f32 %v1732, %v1810
    %v1812 = vpop.f32.mrb[0].mxu0
    %1813 = vmatprep.mubr.f32.mxu0 0.0
    %1814 = vmatmul.mubr.f32.gmra.mrb[0].mxu0 %v1742
    %v1815 = vpop.f32.mrb[0].mxu0
    %v1816 = vadd.f32 %v1732, %v1815
    %v1817 = vpop.f32.mrb[0].mxu0
    %1818 = vdwg.mxu0
    %v1819 = vadd.f32 %v1811, %v85
    %v1820 = vadd.f32 %v1816, %v86
    %1821 = vst.msk [vmem:[%s8] sm:$0xff] %vm100, %v1819
    %1822 = vst.msk [vmem:[%s8 + $0x8] sm:$0xff] %vm100, %v1820
    // Predicated region
    $region50: #{multi_head_attention_forward.1} parent=1 // pred_check
      _
    $region51: #{multi_head_attention_forward.1} parent=1 // pred_check_branch
      %1824 = sbr.rel (0) target = $region53
    $region52: #{multi_head_attention_forward.1} parent=1 // pred_region
      _
    $region53: #{multi_head_attention_forward.1} parent=1 // pred_fallthru
      _
    // Predicated region
    $region54: #{multi_head_attention_forward.1} parent=1 // pred_check
      _
    $region55: #{multi_head_attention_forward.1} parent=1 // pred_check_branch
      %1826 = sbr.rel (0) target = $region57
    $region56: #{multi_head_attention_forward.1} parent=1 // pred_region
      _
    $region57: #{multi_head_attention_forward.1} parent=1 // pred_fallthru
      _
    // Predicated region
    $region58: #{multi_head_attention_forward.1} parent=1 // pred_check
      _
    $region59: #{multi_head_attention_forward.1} parent=1 // pred_check_branch
      %1828 = sbr.rel (0) target = $region61
    $region60: #{multi_head_attention_forward.1} parent=1 // pred_region
      _
    $region61: #{multi_head_attention_forward.1} parent=1 // pred_fallthru
      _
    // Predicated region
    $region62: #{multi_head_attention_forward.1} parent=1 // pred_check
      _
    $region63: #{multi_head_attention_forward.1} parent=1 // pred_check_branch
      %1830 = sbr.rel (0) target = $region65
    $region64: #{multi_head_attention_forward.1} parent=1 // pred_region
      _
    $region65: #{multi_head_attention_forward.1} parent=1 // pred_fallthru
      _
    // Predicated region
    $region66: #{multi_head_attention_forward.1} parent=1 // pred_check
      _
    $region67: #{multi_head_attention_forward.1} parent=1 // pred_check_branch
      %1832 = sbr.rel (0) target = $region69
    $region68: #{multi_head_attention_forward.1} parent=1 // pred_region
      _
    $region69: #{multi_head_attention_forward.1} parent=1 // pred_fallthru
      _
    // Predicated region
    $region70: #{multi_head_attention_forward.1} parent=1 // pred_check
      _
    $region71: #{multi_head_attention_forward.1} parent=1 // pred_check_branch
      %1834 = sbr.rel (0) target = $region73
    $region72: #{multi_head_attention_forward.1} parent=1 // pred_region
      _
    $region73: #{multi_head_attention_forward.1} parent=1 // pred_fallthru
      _
    %1835 = vsyncpa [#allocation3], 1
    %1836 = vsyncpa [#allocation5], 1
    %1837 = vsyncpa [#allocation8], 1

</llo_original>
